<compile_context>
chip_gen: v7x
topology: tpu7x:2x2x1
jax: 0.10.0
libtpu: 0.0.40
codegen_flags: <defaults>
</compile_context>

<pallas_src>
import jax
import jax.numpy as jnp
from jax.experimental import pallas as pl
from jax.experimental.pallas import tpu as pltpu

KERNEL_SIZE = 3
PAD = 1
POOL = 2


def _shifted_tap(h, offset):
    """t[:, l] = h[:, l + offset], zero-filled outside [0, L).

    Built as a contiguous lane slice + zero strip: no (L+2)-long padded copy of
    the activation is ever materialized, and there is no roll-direction /
    wrap-around masking to get wrong.
    """
    c, length = h.shape
    if offset == 0:
        return h
    z = jnp.zeros((c, abs(offset)), h.dtype)
    if offset > 0:
        return jnp.concatenate([h[:, offset:], z], axis=1)
    return jnp.concatenate([z, h[:, :length + offset]], axis=1)


def _f_conv_drop_kernel(x_ref, w1_ref, b1_ref, w2_ref, b2_ref, o_ref):
    """One tile of TB batch elements per grid step.

    x_ref : (TB, C_in, L)         f32, NCW, read directly (no wrapper cast/copy)
    w1_ref: (C_out, K*C_in)       bf16, weights-as-LHS, tap-major contraction
    b1_ref: (C_out, 1)            f32
    w2_ref: (C_out, K*C_out)      bf16
    b2_ref: (C_out, 1)            f32
    o_ref : (TB, C_out, L//POOL)  NCW output
    """
    tb, _, L = x_ref.shape
    c_out = o_ref.shape[1]
    l_out = o_ref.shape[2]

    def conv_relu(h, w_ref, b_ref):
        # h: (C, L) bf16, length on lanes.  ONE fused MXU matmul per conv:
        # (C_out, K*C) x (K*C, L) -> (C_out, L), f32 accumulation.  The matmul
        # output is already channel-major / length-on-lanes (NCW), so there is
        # no lane<->sublane transpose anywhere on the conv path.
        cols = jnp.concatenate(
            [_shifted_tap(h, k - PAD) for k in range(KERNEL_SIZE)], axis=0)
        acc = jnp.dot(w_ref[...], cols, preferred_element_type=jnp.float32)
        return jnp.maximum(acc + b_ref[...], 0.0)          # (C_out, L) f32

    h2_list = []
    for b in range(tb):                                     # static unroll, tb small
        xb = x_ref[b].astype(jnp.bfloat16)                  # bf16 marshaling only here
        h1 = conv_relu(xb, w1_ref, b1_ref)                  # (C_out, L) f32
        h2 = conv_relu(h1.astype(jnp.bfloat16), w2_ref, b2_ref)
        h2_list.append(h2)

    # Dropout(0.5): identity in eval/inference mode (see TODO at top).

    h2_all = jnp.stack(h2_list, axis=0)                     # (TB, C_out, L) f32

    # AvgPool1d(kernel=stride=POOL): 2:1 compaction along the lane (length)
    # axis via a channels-last bounce (XLU) + leading-axis split + reduce.
    h2_t = jnp.transpose(h2_all, (0, 2, 1))                 # (TB, L, C_out)
    pooled = h2_t.reshape(tb, l_out, POOL, c_out).sum(axis=2) * (1.0 / POOL)
    o_ref[...] = jnp.transpose(pooled, (0, 2, 1)).astype(o_ref.dtype)


def _choose_block_b(batch, length):
    """Batch tile (and in-kernel unroll factor) per grid step.

    Small problems: one grid step (v5e/v6e have a single TensorCore, per-step
    pipeline overhead ~0.35us dominates).  Large per-step work (realistic L):
    keep >=2 steps so v7x's two TensorCores can split the 'parallel' axis.
    """
    tb = min(batch, 8)                       # bound trace-time unrolling
    while tb > 1 and batch % tb != 0:
        tb -= 1
    if batch > 1 and length >= 1024:
        while tb > 1 and batch // tb < 2:    # ensure >=2 steps for v7x megacore
            tb -= 1
            while tb > 1 and batch % tb != 0:
                tb -= 1
    return max(tb, 1)


@jax.jit
def f_conv_drop_forward(x_ncw, w1, b1, w2, b2):
    """x_ncw: (B, C_in, L) f32 NCW.  w1: (C_out, C_in, K), b1: (C_out,),
    w2: (C_out, C_out, K), b2: (C_out,).  Returns (B, C_out, L // POOL)."""
    B, c_in, L = x_ncw.shape
    c_out = w1.shape[0]
    assert L % POOL == 0
    l_out = L // POOL
    tb = _choose_block_b(B, L)

    # Weights in (C_out, K*C) "weights-as-LHS" layout, tap-major along the
    # contraction axis so it matches the im2col tap concat order.  Only these
    # tiny arrays are cast wrapper-side; x stays f32 (no extra HBM pass).
    w1f = (jnp.transpose(w1, (0, 2, 1))
           .reshape(c_out, KERNEL_SIZE * c_in).astype(jnp.bfloat16))
    w2f = (jnp.transpose(w2, (0, 2, 1))
           .reshape(c_out, KERNEL_SIZE * c_out).astype(jnp.bfloat16))
    b1r = b1.reshape(c_out, 1).astype(jnp.float32)
    b2r = b2.reshape(c_out, 1).astype(jnp.float32)

    # Explicit VMEM budget (v7x has only 64 MiB physical / 32 MiB scoped
    # default): double-buffered in/out tiles + ~im2col-sized intermediates.
    in_tile = tb * c_in * L * 4
    out_tile = tb * c_out * l_out * 4
    interm = 16 * tb * c_out * L * 4
    vmem_limit = int(min(48 * 1024 * 1024,
                         max(16 * 1024 * 1024,
                             2 * (in_tile + out_tile) + interm)))

    return pl.pallas_call(
        _f_conv_drop_kernel,
        out_shape=jax.ShapeDtypeStruct((B, c_out, l_out), x_ncw.dtype),
        grid_spec=pltpu.PrefetchScalarGridSpec(
            num_scalar_prefetch=0,
            grid=(B // tb,),
            in_specs=[
                pl.BlockSpec((tb, c_in, L), lambda i: (i, 0, 0)),
                pl.BlockSpec((c_out, KERNEL_SIZE * c_in), lambda i: (0, 0)),
                pl.BlockSpec((c_out, 1), lambda i: (0, 0)),
                pl.BlockSpec((c_out, KERNEL_SIZE * c_out), lambda i: (0, 0)),
                pl.BlockSpec((c_out, 1), lambda i: (0, 0)),
            ],
            out_specs=pl.BlockSpec((tb, c_out, l_out), lambda i: (i, 0, 0)),
        ),
        compiler_params=pltpu.CompilerParams(
            dimension_semantics=("parallel",),
            vmem_limit_bytes=vmem_limit,
        ),
    )(x_ncw, w1f, b1r, w2f, b2r)


def _reference(x, w1, b1, w2, b2):
    """Pure-JAX reference with the same bf16 operand rounding as the kernel."""
    f32 = jnp.float32

    def conv(h, w, b):
        hb = h.astype(jnp.bfloat16).astype(f32)
        wb = w.astype(jnp.bfloat16).astype(f32)
        hp = jnp.pad(hb, ((0, 0), (0, 0), (PAD, PAD)))
        Bsz, _, L = h.shape
        co = w.shape[0]
        acc = jnp.zeros((Bsz, co, L), f32)
        for k in range(KERNEL_SIZE):
            acc = acc + jnp.einsum("bcl,oc->bol", hp[:, :, k:k + L], wb[:, :, k])
        return acc + b[None, :, None].astype(f32)

    h1 = jnp.maximum(conv(x, w1, b1), 0.0)
    h2 = jnp.maximum(conv(h1, w2, b2), 0.0)
    return (h2[:, :, 0::POOL] + h2[:, :, 1::POOL]) * (1.0 / POOL)


if __name__ == "__main__":
    # small shapes: batch=4, input_dim=4, output_dim=8, seq=16
    B, C_IN, C_OUT, L = 4, 4, 8, 16

    key = jax.random.PRNGKey(0)
    kx, kw1, kb1, kw2, kb2 = jax.random.split(key, 5)

    x = jax.random.normal(kx, (B, C_IN, L), dtype=jnp.float32)
    # PyTorch Conv1d parameter shapes: weight (C_out, C_in, K), bias (C_out,)
    w1 = jax.random.normal(kw1, (C_OUT, C_IN, KERNEL_SIZE), dtype=jnp.float32) * 0.3
    b1 = jax.random.normal(kb1, (C_OUT,), dtype=jnp.float32) * 0.1
    w2 = jax.random.normal(kw2, (C_OUT, C_OUT, KERNEL_SIZE), dtype=jnp.float32) * 0.3
    b2 = jax.random.normal(kb2, (C_OUT,), dtype=jnp.float32) * 0.1

    out = jax.block_until_ready(f_conv_drop_forward(x, w1, b1, w2, b2))
    ref = _reference(x, w1, b1, w2, b2)

    assert out.shape == (B, C_OUT, L // POOL), out.shape
    err = float(jnp.max(jnp.abs(out - ref)))
    assert jnp.allclose(out, ref, atol=1e-3, rtol=1e-3), err

    print("KERNEL_OK")
</pallas_src>

<mosaic_0001>
module attributes {stable_mosaic.version = 11 : i64} {
  func.func @_f_conv_drop_kernel(%arg0: i32, %arg1: memref<4x4x16xf32, #tpu.memory_space<vmem>>, %arg2: memref<8x12xbf16, #tpu.memory_space<vmem>>, %arg3: memref<8x1xf32, #tpu.memory_space<vmem>>, %arg4: memref<8x24xbf16, #tpu.memory_space<vmem>>, %arg5: memref<8x1xf32, #tpu.memory_space<vmem>>, %arg6: memref<4x8x8xf32, #tpu.memory_space<vmem>>) attributes {dimension_semantics = [#tpu.dimension_semantics<parallel>], iteration_bounds = array<i64: 1>, scalar_prefetch = 0 : i64, scratch_operands = 0 : i64, tpu.core_type = #tpu.core_type<tc>, window_params = [{transform_indices = @transform_0, window_bounds = array<i64: 4, 4, 16>}, {pipeline_mode = #tpu.pipeline_mode<synchronous>, transform_indices = @transform_1, window_bounds = array<i64: 8, 12>}, {pipeline_mode = #tpu.pipeline_mode<synchronous>, transform_indices = @transform_2, window_bounds = array<i64: 8, 1>}, {pipeline_mode = #tpu.pipeline_mode<synchronous>, transform_indices = @transform_3, window_bounds = array<i64: 8, 24>}, {pipeline_mode = #tpu.pipeline_mode<synchronous>, transform_indices = @transform_4, window_bounds = array<i64: 8, 1>}, {transform_indices = @transform_5, window_bounds = array<i64: 4, 8, 8>}]} {
    %c0 = arith.constant 0 : index
    %c0_0 = arith.constant 0 : index
    %c0_1 = arith.constant 0 : index
    %0 = vector.load %arg1[%c0, %c0_0, %c0_1] : memref<4x4x16xf32, #tpu.memory_space<vmem>>, vector<1x4x16xf32>
    %1 = vector.shape_cast %0 : vector<1x4x16xf32> to vector<4x16xf32>
    %2 = arith.truncf %1 : vector<4x16xf32> to vector<4x16xbf16>
    %cst = arith.constant 0.000000e+00 : bf16
    %3 = vector.broadcast %cst : bf16 to vector<4x1xbf16>
    %4 = vector.extract_strided_slice %2 {offsets = [0, 0], sizes = [4, 15], strides = [1, 1]} : vector<4x16xbf16> to vector<4x15xbf16>
    %5 = tpu.concatenate %3, %4 in 1 : vector<4x1xbf16>, vector<4x15xbf16> -> vector<4x16xbf16>
    %cst_2 = arith.constant 0.000000e+00 : bf16
    %6 = vector.broadcast %cst_2 : bf16 to vector<4x1xbf16>
    %7 = vector.extract_strided_slice %2 {offsets = [0, 1], sizes = [4, 15], strides = [1, 1]} : vector<4x16xbf16> to vector<4x15xbf16>
    %8 = tpu.concatenate %7, %6 in 1 : vector<4x15xbf16>, vector<4x1xbf16> -> vector<4x16xbf16>
    %9 = tpu.concatenate %5, %2, %8 in 0 : vector<4x16xbf16>, vector<4x16xbf16>, vector<4x16xbf16> -> vector<12x16xbf16>
    %c0_3 = arith.constant 0 : index
    %c0_4 = arith.constant 0 : index
    %10 = vector.load %arg2[%c0_3, %c0_4] : memref<8x12xbf16, #tpu.memory_space<vmem>>, vector<8x12xbf16>
    %cst_5 = arith.constant dense<0.000000e+00> : vector<8x16xf32>
    %11 = tpu.matmul %10, %9, %cst_5 {dimension_numbers = #tpu.dot_dimension_numbers<[1], [0], [0], [1], [0, 0, 1, 1], [], []>} : vector<8x12xbf16>, vector<12x16xbf16>, vector<8x16xf32> -> vector<8x16xf32>
    %c0_6 = arith.constant 0 : index
    %c0_7 = arith.constant 0 : index
    %12 = vector.load %arg3[%c0_6, %c0_7] : memref<8x1xf32, #tpu.memory_space<vmem>>, vector<8x1xf32>
    %13 = vector.broadcast %12 : vector<8x1xf32> to vector<8x16xf32>
    %14 = arith.addf %11, %13 : vector<8x16xf32>
    %cst_8 = arith.constant 0.000000e+00 : f32
    %15 = vector.broadcast %cst_8 : f32 to vector<8x16xf32>
    %16 = arith.maximumf %14, %15 : vector<8x16xf32>
    %17 = arith.truncf %16 : vector<8x16xf32> to vector<8x16xbf16>
    %cst_9 = arith.constant 0.000000e+00 : bf16
    %18 = vector.broadcast %cst_9 : bf16 to vector<8x1xbf16>
    %19 = vector.extract_strided_slice %17 {offsets = [0, 0], sizes = [8, 15], strides = [1, 1]} : vector<8x16xbf16> to vector<8x15xbf16>
    %20 = tpu.concatenate %18, %19 in 1 : vector<8x1xbf16>, vector<8x15xbf16> -> vector<8x16xbf16>
    %cst_10 = arith.constant 0.000000e+00 : bf16
    %21 = vector.broadcast %cst_10 : bf16 to vector<8x1xbf16>
    %22 = vector.extract_strided_slice %17 {offsets = [0, 1], sizes = [8, 15], strides = [1, 1]} : vector<8x16xbf16> to vector<8x15xbf16>
    %23 = tpu.concatenate %22, %21 in 1 : vector<8x15xbf16>, vector<8x1xbf16> -> vector<8x16xbf16>
    %24 = tpu.concatenate %20, %17, %23 in 0 : vector<8x16xbf16>, vector<8x16xbf16>, vector<8x16xbf16> -> vector<24x16xbf16>
    %c0_11 = arith.constant 0 : index
    %c0_12 = arith.constant 0 : index
    %25 = vector.load %arg4[%c0_11, %c0_12] : memref<8x24xbf16, #tpu.memory_space<vmem>>, vector<8x24xbf16>
    %cst_13 = arith.constant dense<0.000000e+00> : vector<8x16xf32>
    %26 = tpu.matmul %25, %24, %cst_13 {dimension_numbers = #tpu.dot_dimension_numbers<[1], [0], [0], [1], [0, 0, 1, 1], [], []>} : vector<8x24xbf16>, vector<24x16xbf16>, vector<8x16xf32> -> vector<8x16xf32>
    %c0_14 = arith.constant 0 : index
    %c0_15 = arith.constant 0 : index
    %27 = vector.load %arg5[%c0_14, %c0_15] : memref<8x1xf32, #tpu.memory_space<vmem>>, vector<8x1xf32>
    %28 = vector.broadcast %27 : vector<8x1xf32> to vector<8x16xf32>
    %29 = arith.addf %26, %28 : vector<8x16xf32>
    %cst_16 = arith.constant 0.000000e+00 : f32
    %30 = vector.broadcast %cst_16 : f32 to vector<8x16xf32>
    %31 = arith.maximumf %29, %30 : vector<8x16xf32>
    %c1 = arith.constant 1 : index
    %c0_17 = arith.constant 0 : index
    %c0_18 = arith.constant 0 : index
    %32 = vector.load %arg1[%c1, %c0_17, %c0_18] : memref<4x4x16xf32, #tpu.memory_space<vmem>>, vector<1x4x16xf32>
    %33 = vector.shape_cast %32 : vector<1x4x16xf32> to vector<4x16xf32>
    %34 = arith.truncf %33 : vector<4x16xf32> to vector<4x16xbf16>
    %cst_19 = arith.constant 0.000000e+00 : bf16
    %35 = vector.broadcast %cst_19 : bf16 to vector<4x1xbf16>
    %36 = vector.extract_strided_slice %34 {offsets = [0, 0], sizes = [4, 15], strides = [1, 1]} : vector<4x16xbf16> to vector<4x15xbf16>
    %37 = tpu.concatenate %35, %36 in 1 : vector<4x1xbf16>, vector<4x15xbf16> -> vector<4x16xbf16>
    %cst_20 = arith.constant 0.000000e+00 : bf16
    %38 = vector.broadcast %cst_20 : bf16 to vector<4x1xbf16>
    %39 = vector.extract_strided_slice %34 {offsets = [0, 1], sizes = [4, 15], strides = [1, 1]} : vector<4x16xbf16> to vector<4x15xbf16>
    %40 = tpu.concatenate %39, %38 in 1 : vector<4x15xbf16>, vector<4x1xbf16> -> vector<4x16xbf16>
    %41 = tpu.concatenate %37, %34, %40 in 0 : vector<4x16xbf16>, vector<4x16xbf16>, vector<4x16xbf16> -> vector<12x16xbf16>
    %c0_21 = arith.constant 0 : index
    %c0_22 = arith.constant 0 : index
    %42 = vector.load %arg2[%c0_21, %c0_22] : memref<8x12xbf16, #tpu.memory_space<vmem>>, vector<8x12xbf16>
    %cst_23 = arith.constant dense<0.000000e+00> : vector<8x16xf32>
    %43 = tpu.matmul %42, %41, %cst_23 {dimension_numbers = #tpu.dot_dimension_numbers<[1], [0], [0], [1], [0, 0, 1, 1], [], []>} : vector<8x12xbf16>, vector<12x16xbf16>, vector<8x16xf32> -> vector<8x16xf32>
    %c0_24 = arith.constant 0 : index
    %c0_25 = arith.constant 0 : index
    %44 = vector.load %arg3[%c0_24, %c0_25] : memref<8x1xf32, #tpu.memory_space<vmem>>, vector<8x1xf32>
    %45 = vector.broadcast %44 : vector<8x1xf32> to vector<8x16xf32>
    %46 = arith.addf %43, %45 : vector<8x16xf32>
    %cst_26 = arith.constant 0.000000e+00 : f32
    %47 = vector.broadcast %cst_26 : f32 to vector<8x16xf32>
    %48 = arith.maximumf %46, %47 : vector<8x16xf32>
    %49 = arith.truncf %48 : vector<8x16xf32> to vector<8x16xbf16>
    %cst_27 = arith.constant 0.000000e+00 : bf16
    %50 = vector.broadcast %cst_27 : bf16 to vector<8x1xbf16>
    %51 = vector.extract_strided_slice %49 {offsets = [0, 0], sizes = [8, 15], strides = [1, 1]} : vector<8x16xbf16> to vector<8x15xbf16>
    %52 = tpu.concatenate %50, %51 in 1 : vector<8x1xbf16>, vector<8x15xbf16> -> vector<8x16xbf16>
    %cst_28 = arith.constant 0.000000e+00 : bf16
    %53 = vector.broadcast %cst_28 : bf16 to vector<8x1xbf16>
    %54 = vector.extract_strided_slice %49 {offsets = [0, 1], sizes = [8, 15], strides = [1, 1]} : vector<8x16xbf16> to vector<8x15xbf16>
    %55 = tpu.concatenate %54, %53 in 1 : vector<8x15xbf16>, vector<8x1xbf16> -> vector<8x16xbf16>
    %56 = tpu.concatenate %52, %49, %55 in 0 : vector<8x16xbf16>, vector<8x16xbf16>, vector<8x16xbf16> -> vector<24x16xbf16>
    %c0_29 = arith.constant 0 : index
    %c0_30 = arith.constant 0 : index
    %57 = vector.load %arg4[%c0_29, %c0_30] : memref<8x24xbf16, #tpu.memory_space<vmem>>, vector<8x24xbf16>
    %cst_31 = arith.constant dense<0.000000e+00> : vector<8x16xf32>
    %58 = tpu.matmul %57, %56, %cst_31 {dimension_numbers = #tpu.dot_dimension_numbers<[1], [0], [0], [1], [0, 0, 1, 1], [], []>} : vector<8x24xbf16>, vector<24x16xbf16>, vector<8x16xf32> -> vector<8x16xf32>
    %c0_32 = arith.constant 0 : index
    %c0_33 = arith.constant 0 : index
    %59 = vector.load %arg5[%c0_32, %c0_33] : memref<8x1xf32, #tpu.memory_space<vmem>>, vector<8x1xf32>
    %60 = vector.broadcast %59 : vector<8x1xf32> to vector<8x16xf32>
    %61 = arith.addf %58, %60 : vector<8x16xf32>
    %cst_34 = arith.constant 0.000000e+00 : f32
    %62 = vector.broadcast %cst_34 : f32 to vector<8x16xf32>
    %63 = arith.maximumf %61, %62 : vector<8x16xf32>
    %c2 = arith.constant 2 : index
    %c0_35 = arith.constant 0 : index
    %c0_36 = arith.constant 0 : index
    %64 = vector.load %arg1[%c2, %c0_35, %c0_36] : memref<4x4x16xf32, #tpu.memory_space<vmem>>, vector<1x4x16xf32>
    %65 = vector.shape_cast %64 : vector<1x4x16xf32> to vector<4x16xf32>
    %66 = arith.truncf %65 : vector<4x16xf32> to vector<4x16xbf16>
    %cst_37 = arith.constant 0.000000e+00 : bf16
    %67 = vector.broadcast %cst_37 : bf16 to vector<4x1xbf16>
    %68 = vector.extract_strided_slice %66 {offsets = [0, 0], sizes = [4, 15], strides = [1, 1]} : vector<4x16xbf16> to vector<4x15xbf16>
    %69 = tpu.concatenate %67, %68 in 1 : vector<4x1xbf16>, vector<4x15xbf16> -> vector<4x16xbf16>
    %cst_38 = arith.constant 0.000000e+00 : bf16
    %70 = vector.broadcast %cst_38 : bf16 to vector<4x1xbf16>
    %71 = vector.extract_strided_slice %66 {offsets = [0, 1], sizes = [4, 15], strides = [1, 1]} : vector<4x16xbf16> to vector<4x15xbf16>
    %72 = tpu.concatenate %71, %70 in 1 : vector<4x15xbf16>, vector<4x1xbf16> -> vector<4x16xbf16>
    %73 = tpu.concatenate %69, %66, %72 in 0 : vector<4x16xbf16>, vector<4x16xbf16>, vector<4x16xbf16> -> vector<12x16xbf16>
    %c0_39 = arith.constant 0 : index
    %c0_40 = arith.constant 0 : index
    %74 = vector.load %arg2[%c0_39, %c0_40] : memref<8x12xbf16, #tpu.memory_space<vmem>>, vector<8x12xbf16>
    %cst_41 = arith.constant dense<0.000000e+00> : vector<8x16xf32>
    %75 = tpu.matmul %74, %73, %cst_41 {dimension_numbers = #tpu.dot_dimension_numbers<[1], [0], [0], [1], [0, 0, 1, 1], [], []>} : vector<8x12xbf16>, vector<12x16xbf16>, vector<8x16xf32> -> vector<8x16xf32>
    %c0_42 = arith.constant 0 : index
    %c0_43 = arith.constant 0 : index
    %76 = vector.load %arg3[%c0_42, %c0_43] : memref<8x1xf32, #tpu.memory_space<vmem>>, vector<8x1xf32>
    %77 = vector.broadcast %76 : vector<8x1xf32> to vector<8x16xf32>
    %78 = arith.addf %75, %77 : vector<8x16xf32>
    %cst_44 = arith.constant 0.000000e+00 : f32
    %79 = vector.broadcast %cst_44 : f32 to vector<8x16xf32>
    %80 = arith.maximumf %78, %79 : vector<8x16xf32>
    %81 = arith.truncf %80 : vector<8x16xf32> to vector<8x16xbf16>
    %cst_45 = arith.constant 0.000000e+00 : bf16
    %82 = vector.broadcast %cst_45 : bf16 to vector<8x1xbf16>
    %83 = vector.extract_strided_slice %81 {offsets = [0, 0], sizes = [8, 15], strides = [1, 1]} : vector<8x16xbf16> to vector<8x15xbf16>
    %84 = tpu.concatenate %82, %83 in 1 : vector<8x1xbf16>, vector<8x15xbf16> -> vector<8x16xbf16>
    %cst_46 = arith.constant 0.000000e+00 : bf16
    %85 = vector.broadcast %cst_46 : bf16 to vector<8x1xbf16>
    %86 = vector.extract_strided_slice %81 {offsets = [0, 1], sizes = [8, 15], strides = [1, 1]} : vector<8x16xbf16> to vector<8x15xbf16>
    %87 = tpu.concatenate %86, %85 in 1 : vector<8x15xbf16>, vector<8x1xbf16> -> vector<8x16xbf16>
    %88 = tpu.concatenate %84, %81, %87 in 0 : vector<8x16xbf16>, vector<8x16xbf16>, vector<8x16xbf16> -> vector<24x16xbf16>
    %c0_47 = arith.constant 0 : index
    %c0_48 = arith.constant 0 : index
    %89 = vector.load %arg4[%c0_47, %c0_48] : memref<8x24xbf16, #tpu.memory_space<vmem>>, vector<8x24xbf16>
    %cst_49 = arith.constant dense<0.000000e+00> : vector<8x16xf32>
    %90 = tpu.matmul %89, %88, %cst_49 {dimension_numbers = #tpu.dot_dimension_numbers<[1], [0], [0], [1], [0, 0, 1, 1], [], []>} : vector<8x24xbf16>, vector<24x16xbf16>, vector<8x16xf32> -> vector<8x16xf32>
    %c0_50 = arith.constant 0 : index
    %c0_51 = arith.constant 0 : index
    %91 = vector.load %arg5[%c0_50, %c0_51] : memref<8x1xf32, #tpu.memory_space<vmem>>, vector<8x1xf32>
    %92 = vector.broadcast %91 : vector<8x1xf32> to vector<8x16xf32>
    %93 = arith.addf %90, %92 : vector<8x16xf32>
    %cst_52 = arith.constant 0.000000e+00 : f32
    %94 = vector.broadcast %cst_52 : f32 to vector<8x16xf32>
    %95 = arith.maximumf %93, %94 : vector<8x16xf32>
    %c3 = arith.constant 3 : index
    %c0_53 = arith.constant 0 : index
    %c0_54 = arith.constant 0 : index
    %96 = vector.load %arg1[%c3, %c0_53, %c0_54] : memref<4x4x16xf32, #tpu.memory_space<vmem>>, vector<1x4x16xf32>
    %97 = vector.shape_cast %96 : vector<1x4x16xf32> to vector<4x16xf32>
    %98 = arith.truncf %97 : vector<4x16xf32> to vector<4x16xbf16>
    %cst_55 = arith.constant 0.000000e+00 : bf16
    %99 = vector.broadcast %cst_55 : bf16 to vector<4x1xbf16>
    %100 = vector.extract_strided_slice %98 {offsets = [0, 0], sizes = [4, 15], strides = [1, 1]} : vector<4x16xbf16> to vector<4x15xbf16>
    %101 = tpu.concatenate %99, %100 in 1 : vector<4x1xbf16>, vector<4x15xbf16> -> vector<4x16xbf16>
    %cst_56 = arith.constant 0.000000e+00 : bf16
    %102 = vector.broadcast %cst_56 : bf16 to vector<4x1xbf16>
    %103 = vector.extract_strided_slice %98 {offsets = [0, 1], sizes = [4, 15], strides = [1, 1]} : vector<4x16xbf16> to vector<4x15xbf16>
    %104 = tpu.concatenate %103, %102 in 1 : vector<4x15xbf16>, vector<4x1xbf16> -> vector<4x16xbf16>
    %105 = tpu.concatenate %101, %98, %104 in 0 : vector<4x16xbf16>, vector<4x16xbf16>, vector<4x16xbf16> -> vector<12x16xbf16>
    %c0_57 = arith.constant 0 : index
    %c0_58 = arith.constant 0 : index
    %106 = vector.load %arg2[%c0_57, %c0_58] : memref<8x12xbf16, #tpu.memory_space<vmem>>, vector<8x12xbf16>
    %cst_59 = arith.constant dense<0.000000e+00> : vector<8x16xf32>
    %107 = tpu.matmul %106, %105, %cst_59 {dimension_numbers = #tpu.dot_dimension_numbers<[1], [0], [0], [1], [0, 0, 1, 1], [], []>} : vector<8x12xbf16>, vector<12x16xbf16>, vector<8x16xf32> -> vector<8x16xf32>
    %c0_60 = arith.constant 0 : index
    %c0_61 = arith.constant 0 : index
    %108 = vector.load %arg3[%c0_60, %c0_61] : memref<8x1xf32, #tpu.memory_space<vmem>>, vector<8x1xf32>
    %109 = vector.broadcast %108 : vector<8x1xf32> to vector<8x16xf32>
    %110 = arith.addf %107, %109 : vector<8x16xf32>
    %cst_62 = arith.constant 0.000000e+00 : f32
    %111 = vector.broadcast %cst_62 : f32 to vector<8x16xf32>
    %112 = arith.maximumf %110, %111 : vector<8x16xf32>
    %113 = arith.truncf %112 : vector<8x16xf32> to vector<8x16xbf16>
    %cst_63 = arith.constant 0.000000e+00 : bf16
    %114 = vector.broadcast %cst_63 : bf16 to vector<8x1xbf16>
    %115 = vector.extract_strided_slice %113 {offsets = [0, 0], sizes = [8, 15], strides = [1, 1]} : vector<8x16xbf16> to vector<8x15xbf16>
    %116 = tpu.concatenate %114, %115 in 1 : vector<8x1xbf16>, vector<8x15xbf16> -> vector<8x16xbf16>
    %cst_64 = arith.constant 0.000000e+00 : bf16
    %117 = vector.broadcast %cst_64 : bf16 to vector<8x1xbf16>
    %118 = vector.extract_strided_slice %113 {offsets = [0, 1], sizes = [8, 15], strides = [1, 1]} : vector<8x16xbf16> to vector<8x15xbf16>
    %119 = tpu.concatenate %118, %117 in 1 : vector<8x15xbf16>, vector<8x1xbf16> -> vector<8x16xbf16>
    %120 = tpu.concatenate %116, %113, %119 in 0 : vector<8x16xbf16>, vector<8x16xbf16>, vector<8x16xbf16> -> vector<24x16xbf16>
    %c0_65 = arith.constant 0 : index
    %c0_66 = arith.constant 0 : index
    %121 = vector.load %arg4[%c0_65, %c0_66] : memref<8x24xbf16, #tpu.memory_space<vmem>>, vector<8x24xbf16>
    %cst_67 = arith.constant dense<0.000000e+00> : vector<8x16xf32>
    %122 = tpu.matmul %121, %120, %cst_67 {dimension_numbers = #tpu.dot_dimension_numbers<[1], [0], [0], [1], [0, 0, 1, 1], [], []>} : vector<8x24xbf16>, vector<24x16xbf16>, vector<8x16xf32> -> vector<8x16xf32>
    %c0_68 = arith.constant 0 : index
    %c0_69 = arith.constant 0 : index
    %123 = vector.load %arg5[%c0_68, %c0_69] : memref<8x1xf32, #tpu.memory_space<vmem>>, vector<8x1xf32>
    %124 = vector.broadcast %123 : vector<8x1xf32> to vector<8x16xf32>
    %125 = arith.addf %122, %124 : vector<8x16xf32>
    %cst_70 = arith.constant 0.000000e+00 : f32
    %126 = vector.broadcast %cst_70 : f32 to vector<8x16xf32>
    %127 = arith.maximumf %125, %126 : vector<8x16xf32>
    %128 = vector.shape_cast %31 : vector<8x16xf32> to vector<1x8x16xf32>
    %129 = vector.shape_cast %63 : vector<8x16xf32> to vector<1x8x16xf32>
    %130 = vector.shape_cast %95 : vector<8x16xf32> to vector<1x8x16xf32>
    %131 = vector.shape_cast %127 : vector<8x16xf32> to vector<1x8x16xf32>
    %132 = tpu.concatenate %128, %129, %130, %131 in 0 : vector<1x8x16xf32>, vector<1x8x16xf32>, vector<1x8x16xf32>, vector<1x8x16xf32> -> vector<4x8x16xf32>
    %133 = tpu.transpose %132, [0, 2, 1] : vector<4x8x16xf32> -> vector<4x16x8xf32>
    %134 = vector.shape_cast %133 : vector<4x16x8xf32> to vector<4x8x2x8xf32>
    %cst_71 = arith.constant dense<0.000000e+00> : vector<4x8x8xf32>
    %135 = vector.multi_reduction <add>, %134, %cst_71 [2] : vector<4x8x2x8xf32> to vector<4x8x8xf32>
    %cst_72 = arith.constant 5.000000e-01 : f32
    %136 = vector.broadcast %cst_72 : f32 to vector<4x8x8xf32>
    %137 = arith.mulf %135, %136 : vector<4x8x8xf32>
    %138 = tpu.transpose %137, [0, 2, 1] : vector<4x8x8xf32> -> vector<4x8x8xf32>
    %c0_73 = arith.constant 0 : index
    %c0_74 = arith.constant 0 : index
    %c0_75 = arith.constant 0 : index
    %139 = vector.load %arg6[%c0_73, %c0_74, %c0_75] : memref<4x8x8xf32, #tpu.memory_space<vmem>>, vector<4x8x8xf32>
    tpu.vector_store %arg6[%c0_73, %c0_74, %c0_75], %138 {strides = array<i32>} : memref<4x8x8xf32, #tpu.memory_space<vmem>>, vector<4x8x8xf32>,
    return
  }
  func.func @transform_0(%arg0: i32) -> (i32, i32, i32) {
    %c0_i32 = arith.constant 0 : i32
    %c0_i32_0 = arith.constant 0 : i32
    %c0_i32_1 = arith.constant 0 : i32
    return %arg0, %c0_i32, %c0_i32_0 : i32, i32, i32
  }
  func.func @transform_1(%arg0: i32) -> (i32, i32) {
    %c0_i32 = arith.constant 0 : i32
    %c0_i32_0 = arith.constant 0 : i32
    %c0_i32_1 = arith.constant 0 : i32
    return %c0_i32, %c0_i32_0 : i32, i32
  }
  func.func @transform_2(%arg0: i32) -> (i32, i32) {
    %c0_i32 = arith.constant 0 : i32
    %c0_i32_0 = arith.constant 0 : i32
    %c0_i32_1 = arith.constant 0 : i32
    return %c0_i32, %c0_i32_0 : i32, i32
  }
  func.func @transform_3(%arg0: i32) -> (i32, i32) {
    %c0_i32 = arith.constant 0 : i32
    %c0_i32_0 = arith.constant 0 : i32
    %c0_i32_1 = arith.constant 0 : i32
    return %c0_i32, %c0_i32_0 : i32, i32
  }
  func.func @transform_4(%arg0: i32) -> (i32, i32) {
    %c0_i32 = arith.constant 0 : i32
    %c0_i32_0 = arith.constant 0 : i32
    %c0_i32_1 = arith.constant 0 : i32
    return %c0_i32, %c0_i32_0 : i32, i32
  }
  func.func @transform_5(%arg0: i32) -> (i32, i32, i32) {
    %c0_i32 = arith.constant 0 : i32
    %c0_i32_0 = arith.constant 0 : i32
    %c0_i32_1 = arith.constant 0 : i32
    return %arg0, %c0_i32, %c0_i32_0 : i32, i32, i32
  }
}

</mosaic_0001>

<llo_original>
// kernel: f_conv_drop_forward.1
$region0: #{f_conv_drop_forward.1}
  #allocation0 [shape = 'u32[]', space=smem, size = 0x4, offset = 0x4, fixed_abs, tag = 'smem constant byte address 0x4 - core index']
  #allocation1 [shape = 'u32[144,128]{1,0:T(1,128)}', space=vmem, size = 0x12000, scoped, tag = 'internal scratch']
  %s0 = inlined_call_operand.vmem [shape: f32[4,4,16], index: 0, kind: input, shape index: {}]
  %s1 = inlined_call_operand.vmem [shape: bf16[8,12], index: 1, kind: input, shape index: {}]
  %s2 = inlined_call_operand.vmem [shape: f32[8,1], index: 2, kind: input, shape index: {}]
  %s3 = inlined_call_operand.vmem [shape: bf16[8,24], index: 3, kind: input, shape index: {}]
  %s4 = inlined_call_operand.vmem [shape: f32[8,1], index: 4, kind: input, shape index: {}]
  %s5 = inlined_call_operand.hbm [shape: f32[4,8,8], index: 5, kind: output, shape index: {}]
  %s6 = sld [smem:[#allocation0]]
  $region30: #{f_conv_drop_forward.1} parent=0
    _
  %s8 = ssub.s32 1, %s6
  %s9 = scalar_select 0, %s8, %s6
  $region1: #{f_conv_drop_forward.1} parent=0
    #allocation2 [shape = 'u8[16384]{0}', space=vmem, size = 0x4000, scoped, tag = 'output window, operand 0, single buffered']
    #allocation3 [shape = 's32[1]{0}', space=sflag, size = 0x4, scoped, tag = 'scoped memory for f_conv_drop_forward.1']
    %10 = vsyncpa [#allocation3], 0
    // Predicated region
    $region2: #{f_conv_drop_forward.1} parent=1 // pred_check
      _
    $region3: #{f_conv_drop_forward.1} parent=1 // pred_check_branch
      %12 = sbr.rel (0) target = $region5
    $region4: #{f_conv_drop_forward.1} parent=1 // pred_region
      _
    $region5: #{f_conv_drop_forward.1} parent=1 // pred_fallthru
      _
    // Predicated region
    $region6: #{f_conv_drop_forward.1} parent=1 // pred_check
      _
    $region7: #{f_conv_drop_forward.1} parent=1 // pred_check_branch
      %14 = sbr.rel (0) target = $region9
    $region8: #{f_conv_drop_forward.1} parent=1 // pred_region
      _
    $region9: #{f_conv_drop_forward.1} parent=1 // pred_fallthru
      _
    // Predicated region
    $region10: #{f_conv_drop_forward.1} parent=1 // pred_check
      _
    $region11: #{f_conv_drop_forward.1} parent=1 // pred_check_branch
      %16 = sbr.rel (0) target = $region13
    $region12: #{f_conv_drop_forward.1} parent=1 // pred_region
      _
    $region13: #{f_conv_drop_forward.1} parent=1 // pred_fallthru
      _
    // Predicated region
    $region14: #{f_conv_drop_forward.1} parent=1 // pred_check
      _
    $region15: #{f_conv_drop_forward.1} parent=1 // pred_check_branch
      %18 = sbr.rel (0) target = $region17
    $region16: #{f_conv_drop_forward.1} parent=1 // pred_region
      _
    $region17: #{f_conv_drop_forward.1} parent=1 // pred_fallthru
      _
    // Predicated region
    $region18: #{f_conv_drop_forward.1} parent=1 // pred_check
      _
    $region19: #{f_conv_drop_forward.1} parent=1 // pred_check_branch
      %20 = sbr.rel (0) target = $region21
    $region20: #{f_conv_drop_forward.1} parent=1 // pred_region
      _
    $region21: #{f_conv_drop_forward.1} parent=1 // pred_fallthru
      _
    %v22 = vld [vmem:[%s0] sm:$0xf]
    %v23 = vpack.c.bf16 %v22, %v22
    %25 = vrot.lane.b32.xlu0 %v23, 1
    %v26 = vpop.permute.xlu0 %25
    %vm27 = vcmask 7168
    %v30 = vsel %vm27, 0, %v26
    %31 = vrot.lane.b32.xlu0 %v23, 127
    %v32 = vpop.permute.xlu0 %31
    %vm33 = vcmask 121856
    %v35 = vsel %vm33, %v32, 0
    %v36 = vrot.slane %v23, 6
    %v38 = vrot.slane %v35, 4
    %vm39 = vcmask 1041408
    %v41 = vsel %vm39, %v30, %v36
    %vm42 = vcmask 1043456
    %v44 = vsel %vm42, %v41, %v38
    %v45 = vld [vmem:[%s1] sm:$0xf]
    %v46 = vld [vmem:[%s2] sm:$0xff]
    %48 = vset.pattern.permute.xlu0 0
    %49 = vperm.xlu0 %48, %v46
    %v50 = vpop.permute.xlu0 %49
    %vm52 = vcmask 97280
    %v54 = vsel %vm52, %v45, 0
    %vm56 = vcmask 1045504
    %v57 = vsel %vm56, %v44, 0
    %59 = vmatprep.subr.bf16.mxu0 0
    %60 = vmatpush1.bf16.msra.mxu0 %v57
    %61 = vmatprep.subr.bf16.mxu0 0
    %62 = vmatpush1.bf16.msra.mxu0 0
    %63 = vmatprep.subr.bf16.mxu0 0
    %64 = vmatpush1.bf16.msra.mxu0 0
    %65 = vmatprep.subr.bf16.mxu0 0
    %66 = vmatpush1.bf16.msra.mxu0 0
    %67 = vmatprep.subr.bf16.mxu0 0
    %68 = vmatpush1.bf16.msra.mxu0 0
    %69 = vmatprep.subr.bf16.mxu0 0
    %70 = vmatpush1.bf16.msra.mxu0 0
    %71 = vmatprep.subr.bf16.mxu0 0
    %72 = vmatpush1.bf16.msra.mxu0 0
    %73 = vmatprep.subr.bf16.mxu0 0
    %74 = vmatpush1.bf16.msra.mxu0 0
    %75 = vmatprep.subr.bf16.mxu0 0
    %76 = vmatpush1.bf16.msra.mxu0 0
    %77 = vmatprep.subr.bf16.mxu0 0
    %78 = vmatpush1.bf16.msra.mxu0 0
    %79 = vmatprep.subr.bf16.mxu0 0
    %80 = vmatpush1.bf16.msra.mxu0 0
    %81 = vmatprep.subr.bf16.mxu0 0
    %82 = vmatpush1.bf16.msra.mxu0 0
    %83 = vmatprep.subr.bf16.mxu0 0
    %84 = vmatpush1.bf16.msra.mxu0 0
    %85 = vmatprep.subr.bf16.mxu0 0
    %86 = vmatpush1.bf16.msra.mxu0 0
    %87 = vmatprep.subr.bf16.mxu0 0
    %88 = vmatpush1.bf16.msra.mxu0 0
    %89 = vmatprep.subr.bf16.mxu0 0
    %90 = vmatpush1.bf16.msra.mxu0 0
    %91 = vmatprep.mubr.bf16.mxu0 0
    %92 = vmatmul.mubr.bf16.gmra.mrb[0].mxu0 %v54
    %v93 = vpop.f32.mrb[0].mxu0
    %v94 = vadd.f32 %v50, %v93
    %v95 = vpop.f32.mrb[0].mxu0
    %v96 = vpop.f32.mrb[0].mxu0
    %v97 = vpop.f32.mrb[0].mxu0
    %98 = vdwg.mxu0
    %v99 = vmax.f32 %v94, 0.0
    %v100 = vpack.c.bf16 %v99, %v99
    %102 = vrot.lane.b32.xlu0 %v100, 1
    %v103 = vpop.permute.xlu0 %102
    %v105 = vsel %vm27, 0, %v103
    %106 = vrot.lane.b32.xlu0 %v100, 127
    %v107 = vpop.permute.xlu0 %106
    %v109 = vsel %vm33, %v107, 0
    %v110 = vrot.slane %v100, 4
    %v112 = vsel %vm42, %v105, %v110
    %v114 = vld [vmem:[%s3] sm:$0xf]
    %v115 = vld [vmem:[%s4] sm:$0xff]
    %117 = vset.pattern.permute.xlu0 0
    %118 = vperm.xlu0 %117, %v115
    %v119 = vpop.permute.xlu0 %118
    %vm121 = vcmask 195584
    %v123 = vsel %vm121, %v114, 0
    %v125 = vsel %vm42, %v109, 0
    %127 = vmatprep.subr.bf16.mxu0 0
    %128 = vmatpush1.bf16.msra.mxu0 %v112
    %129 = vmatprep.subr.bf16.mxu0 0
    %130 = vmatpush1.bf16.msra.mxu0 %v125
    %131 = vmatprep.subr.bf16.mxu0 0
    %132 = vmatpush1.bf16.msra.mxu0 0
    %133 = vmatprep.subr.bf16.mxu0 0
    %134 = vmatpush1.bf16.msra.mxu0 0
    %135 = vmatprep.subr.bf16.mxu0 0
    %136 = vmatpush1.bf16.msra.mxu0 0
    %137 = vmatprep.subr.bf16.mxu0 0
    %138 = vmatpush1.bf16.msra.mxu0 0
    %139 = vmatprep.subr.bf16.mxu0 0
    %140 = vmatpush1.bf16.msra.mxu0 0
    %141 = vmatprep.subr.bf16.mxu0 0
    %142 = vmatpush1.bf16.msra.mxu0 0
    %143 = vmatprep.subr.bf16.mxu0 0
    %144 = vmatpush1.bf16.msra.mxu0 0
    %145 = vmatprep.subr.bf16.mxu0 0
    %146 = vmatpush1.bf16.msra.mxu0 0
    %147 = vmatprep.subr.bf16.mxu0 0
    %148 = vmatpush1.bf16.msra.mxu0 0
    %149 = vmatprep.subr.bf16.mxu0 0
    %150 = vmatpush1.bf16.msra.mxu0 0
    %151 = vmatprep.subr.bf16.mxu0 0
    %152 = vmatpush1.bf16.msra.mxu0 0
    %153 = vmatprep.subr.bf16.mxu0 0
    %154 = vmatpush1.bf16.msra.mxu0 0
    %155 = vmatprep.subr.bf16.mxu0 0
    %156 = vmatpush1.bf16.msra.mxu0 0
    %157 = vmatprep.subr.bf16.mxu0 0
    %158 = vmatpush1.bf16.msra.mxu0 0
    %159 = vmatprep.mubr.bf16.mxu0 0
    %160 = vmatmul.mubr.bf16.gmra.mrb[0].mxu0 %v123
    %v161 = vpop.f32.mrb[0].mxu0
    %v162 = vadd.f32 %v119, %v161
    %v163 = vpop.f32.mrb[0].mxu0
    %v164 = vpop.f32.mrb[0].mxu0
    %v165 = vpop.f32.mrb[0].mxu0
    %166 = vdwg.mxu0
    %v167 = vmax.f32 %v162, 0.0
    %s168 = scalar_lea.vmem %s0, 4
    %v169 = vld [vmem:[%s168] sm:$0xf]
    %v170 = vpack.c.bf16 %v169, %v169
    %172 = vrot.lane.b32.xlu0 %v170, 1
    %v173 = vpop.permute.xlu0 %172
    %v175 = vsel %vm27, 0, %v173
    %176 = vrot.lane.b32.xlu0 %v170, 127
    %v177 = vpop.permute.xlu0 %176
    %v179 = vsel %vm33, %v177, 0
    %v180 = vrot.slane %v170, 6
    %v182 = vrot.slane %v179, 4
    %v184 = vsel %vm39, %v175, %v180
    %v186 = vsel %vm42, %v184, %v182
    %v187 = vsel %vm56, %v186, 0
    %189 = vmatprep.subr.bf16.mxu0 0
    %190 = vmatpush1.bf16.msra.mxu0 %v187
    %191 = vmatprep.subr.bf16.mxu0 0
    %192 = vmatpush1.bf16.msra.mxu0 0
    %193 = vmatprep.subr.bf16.mxu0 0
    %194 = vmatpush1.bf16.msra.mxu0 0
    %195 = vmatprep.subr.bf16.mxu0 0
    %196 = vmatpush1.bf16.msra.mxu0 0
    %197 = vmatprep.subr.bf16.mxu0 0
    %198 = vmatpush1.bf16.msra.mxu0 0
    %199 = vmatprep.subr.bf16.mxu0 0
    %200 = vmatpush1.bf16.msra.mxu0 0
    %201 = vmatprep.subr.bf16.mxu0 0
    %202 = vmatpush1.bf16.msra.mxu0 0
    %203 = vmatprep.subr.bf16.mxu0 0
    %204 = vmatpush1.bf16.msra.mxu0 0
    %205 = vmatprep.subr.bf16.mxu0 0
    %206 = vmatpush1.bf16.msra.mxu0 0
    %207 = vmatprep.subr.bf16.mxu0 0
    %208 = vmatpush1.bf16.msra.mxu0 0
    %209 = vmatprep.subr.bf16.mxu0 0
    %210 = vmatpush1.bf16.msra.mxu0 0
    %211 = vmatprep.subr.bf16.mxu0 0
    %212 = vmatpush1.bf16.msra.mxu0 0
    %213 = vmatprep.subr.bf16.mxu0 0
    %214 = vmatpush1.bf16.msra.mxu0 0
    %215 = vmatprep.subr.bf16.mxu0 0
    %216 = vmatpush1.bf16.msra.mxu0 0
    %217 = vmatprep.subr.bf16.mxu0 0
    %218 = vmatpush1.bf16.msra.mxu0 0
    %219 = vmatprep.subr.bf16.mxu0 0
    %220 = vmatpush1.bf16.msra.mxu0 0
    %221 = vmatprep.mubr.bf16.mxu0 0
    %222 = vmatmul.mubr.bf16.gmra.mrb[0].mxu0 %v54
    %v223 = vpop.f32.mrb[0].mxu0
    %v224 = vadd.f32 %v50, %v223
    %v225 = vpop.f32.mrb[0].mxu0
    %v226 = vpop.f32.mrb[0].mxu0
    %v227 = vpop.f32.mrb[0].mxu0
    %228 = vdwg.mxu0
    %v229 = vmax.f32 %v224, 0.0
    %v230 = vpack.c.bf16 %v229, %v229
    %232 = vrot.lane.b32.xlu0 %v230, 1
    %v233 = vpop.permute.xlu0 %232
    %v235 = vsel %vm27, 0, %v233
    %236 = vrot.lane.b32.xlu0 %v230, 127
    %v237 = vpop.permute.xlu0 %236
    %v239 = vsel %vm33, %v237, 0
    %v240 = vrot.slane %v230, 4
    %v242 = vsel %vm42, %v235, %v240
    %v244 = vsel %vm42, %v239, 0
    %246 = vmatprep.subr.bf16.mxu0 0
    %247 = vmatpush1.bf16.msra.mxu0 %v242
    %248 = vmatprep.subr.bf16.mxu0 0
    %249 = vmatpush1.bf16.msra.mxu0 %v244
    %250 = vmatprep.subr.bf16.mxu0 0
    %251 = vmatpush1.bf16.msra.mxu0 0
    %252 = vmatprep.subr.bf16.mxu0 0
    %253 = vmatpush1.bf16.msra.mxu0 0
    %254 = vmatprep.subr.bf16.mxu0 0
    %255 = vmatpush1.bf16.msra.mxu0 0
    %256 = vmatprep.subr.bf16.mxu0 0
    %257 = vmatpush1.bf16.msra.mxu0 0
    %258 = vmatprep.subr.bf16.mxu0 0
    %259 = vmatpush1.bf16.msra.mxu0 0
    %260 = vmatprep.subr.bf16.mxu0 0
    %261 = vmatpush1.bf16.msra.mxu0 0
    %262 = vmatprep.subr.bf16.mxu0 0
    %263 = vmatpush1.bf16.msra.mxu0 0
    %264 = vmatprep.subr.bf16.mxu0 0
    %265 = vmatpush1.bf16.msra.mxu0 0
    %266 = vmatprep.subr.bf16.mxu0 0
    %267 = vmatpush1.bf16.msra.mxu0 0
    %268 = vmatprep.subr.bf16.mxu0 0
    %269 = vmatpush1.bf16.msra.mxu0 0
    %270 = vmatprep.subr.bf16.mxu0 0
    %271 = vmatpush1.bf16.msra.mxu0 0
    %272 = vmatprep.subr.bf16.mxu0 0
    %273 = vmatpush1.bf16.msra.mxu0 0
    %274 = vmatprep.subr.bf16.mxu0 0
    %275 = vmatpush1.bf16.msra.mxu0 0
    %276 = vmatprep.subr.bf16.mxu0 0
    %277 = vmatpush1.bf16.msra.mxu0 0
    %278 = vmatprep.mubr.bf16.mxu0 0
    %279 = vmatmul.mubr.bf16.gmra.mrb[0].mxu0 %v123
    %v280 = vpop.f32.mrb[0].mxu0
    %v281 = vadd.f32 %v119, %v280
    %v282 = vpop.f32.mrb[0].mxu0
    %v283 = vpop.f32.mrb[0].mxu0
    %v284 = vpop.f32.mrb[0].mxu0
    %285 = vdwg.mxu0
    %v286 = vmax.f32 %v281, 0.0
    %s287 = scalar_lea.vmem %s0, 8
    %v288 = vld [vmem:[%s287] sm:$0xf]
    %v289 = vpack.c.bf16 %v288, %v288
    %291 = vrot.lane.b32.xlu0 %v289, 1
    %v292 = vpop.permute.xlu0 %291
    %v294 = vsel %vm27, 0, %v292
    %295 = vrot.lane.b32.xlu0 %v289, 127
    %v296 = vpop.permute.xlu0 %295
    %v298 = vsel %vm33, %v296, 0
    %v299 = vrot.slane %v289, 6
    %v301 = vrot.slane %v298, 4
    %v303 = vsel %vm39, %v294, %v299
    %v305 = vsel %vm42, %v303, %v301
    %v306 = vsel %vm56, %v305, 0
    %308 = vmatprep.subr.bf16.mxu0 0
    %309 = vmatpush1.bf16.msra.mxu0 %v306
    %310 = vmatprep.subr.bf16.mxu0 0
    %311 = vmatpush1.bf16.msra.mxu0 0
    %312 = vmatprep.subr.bf16.mxu0 0
    %313 = vmatpush1.bf16.msra.mxu0 0
    %314 = vmatprep.subr.bf16.mxu0 0
    %315 = vmatpush1.bf16.msra.mxu0 0
    %316 = vmatprep.subr.bf16.mxu0 0
    %317 = vmatpush1.bf16.msra.mxu0 0
    %318 = vmatprep.subr.bf16.mxu0 0
    %319 = vmatpush1.bf16.msra.mxu0 0
    %320 = vmatprep.subr.bf16.mxu0 0
    %321 = vmatpush1.bf16.msra.mxu0 0
    %322 = vmatprep.subr.bf16.mxu0 0
    %323 = vmatpush1.bf16.msra.mxu0 0
    %324 = vmatprep.subr.bf16.mxu0 0
    %325 = vmatpush1.bf16.msra.mxu0 0
    %326 = vmatprep.subr.bf16.mxu0 0
    %327 = vmatpush1.bf16.msra.mxu0 0
    %328 = vmatprep.subr.bf16.mxu0 0
    %329 = vmatpush1.bf16.msra.mxu0 0
    %330 = vmatprep.subr.bf16.mxu0 0
    %331 = vmatpush1.bf16.msra.mxu0 0
    %332 = vmatprep.subr.bf16.mxu0 0
    %333 = vmatpush1.bf16.msra.mxu0 0
    %334 = vmatprep.subr.bf16.mxu0 0
    %335 = vmatpush1.bf16.msra.mxu0 0
    %336 = vmatprep.subr.bf16.mxu0 0
    %337 = vmatpush1.bf16.msra.mxu0 0
    %338 = vmatprep.subr.bf16.mxu0 0
    %339 = vmatpush1.bf16.msra.mxu0 0
    %340 = vmatprep.mubr.bf16.mxu0 0
    %341 = vmatmul.mubr.bf16.gmra.mrb[0].mxu0 %v54
    %v342 = vpop.f32.mrb[0].mxu0
    %v343 = vadd.f32 %v50, %v342
    %v344 = vpop.f32.mrb[0].mxu0
    %v345 = vpop.f32.mrb[0].mxu0
    %v346 = vpop.f32.mrb[0].mxu0
    %347 = vdwg.mxu0
    %v348 = vmax.f32 %v343, 0.0
    %v349 = vpack.c.bf16 %v348, %v348
    %351 = vrot.lane.b32.xlu0 %v349, 1
    %v352 = vpop.permute.xlu0 %351
    %v354 = vsel %vm27, 0, %v352
    %355 = vrot.lane.b32.xlu0 %v349, 127
    %v356 = vpop.permute.xlu0 %355
    %v358 = vsel %vm33, %v356, 0
    %v359 = vrot.slane %v349, 4
    %v361 = vsel %vm42, %v354, %v359
    %v363 = vsel %vm42, %v358, 0
    %365 = vmatprep.subr.bf16.mxu0 0
    %366 = vmatpush1.bf16.msra.mxu0 %v361
    %367 = vmatprep.subr.bf16.mxu0 0
    %368 = vmatpush1.bf16.msra.mxu0 %v363
    %369 = vmatprep.subr.bf16.mxu0 0
    %370 = vmatpush1.bf16.msra.mxu0 0
    %371 = vmatprep.subr.bf16.mxu0 0
    %372 = vmatpush1.bf16.msra.mxu0 0
    %373 = vmatprep.subr.bf16.mxu0 0
    %374 = vmatpush1.bf16.msra.mxu0 0
    %375 = vmatprep.subr.bf16.mxu0 0
    %376 = vmatpush1.bf16.msra.mxu0 0
    %377 = vmatprep.subr.bf16.mxu0 0
    %378 = vmatpush1.bf16.msra.mxu0 0
    %379 = vmatprep.subr.bf16.mxu0 0
    %380 = vmatpush1.bf16.msra.mxu0 0
    %381 = vmatprep.subr.bf16.mxu0 0
    %382 = vmatpush1.bf16.msra.mxu0 0
    %383 = vmatprep.subr.bf16.mxu0 0
    %384 = vmatpush1.bf16.msra.mxu0 0
    %385 = vmatprep.subr.bf16.mxu0 0
    %386 = vmatpush1.bf16.msra.mxu0 0
    %387 = vmatprep.subr.bf16.mxu0 0
    %388 = vmatpush1.bf16.msra.mxu0 0
    %389 = vmatprep.subr.bf16.mxu0 0
    %390 = vmatpush1.bf16.msra.mxu0 0
    %391 = vmatprep.subr.bf16.mxu0 0
    %392 = vmatpush1.bf16.msra.mxu0 0
    %393 = vmatprep.subr.bf16.mxu0 0
    %394 = vmatpush1.bf16.msra.mxu0 0
    %395 = vmatprep.subr.bf16.mxu0 0
    %396 = vmatpush1.bf16.msra.mxu0 0
    %397 = vmatprep.mubr.bf16.mxu0 0
    %398 = vmatmul.mubr.bf16.gmra.mrb[0].mxu0 %v123
    %v399 = vpop.f32.mrb[0].mxu0
    %v400 = vadd.f32 %v119, %v399
    %v401 = vpop.f32.mrb[0].mxu0
    %v402 = vpop.f32.mrb[0].mxu0
    %v403 = vpop.f32.mrb[0].mxu0
    %404 = vdwg.mxu0
    %v405 = vmax.f32 %v400, 0.0
    %s406 = scalar_lea.vmem %s0, 12
    %v407 = vld [vmem:[%s406] sm:$0xf]
    %v408 = vpack.c.bf16 %v407, %v407
    %410 = vrot.lane.b32.xlu0 %v408, 1
    %v411 = vpop.permute.xlu0 %410
    %v413 = vsel %vm27, 0, %v411
    %414 = vrot.lane.b32.xlu0 %v408, 127
    %v415 = vpop.permute.xlu0 %414
    %v417 = vsel %vm33, %v415, 0
    %v418 = vrot.slane %v408, 6
    %v420 = vrot.slane %v417, 4
    %v422 = vsel %vm39, %v413, %v418
    %v424 = vsel %vm42, %v422, %v420
    %v425 = vsel %vm56, %v424, 0
    %427 = vmatprep.subr.bf16.mxu0 0
    %428 = vmatpush1.bf16.msra.mxu0 %v425
    %429 = vmatprep.subr.bf16.mxu0 0
    %430 = vmatpush1.bf16.msra.mxu0 0
    %431 = vmatprep.subr.bf16.mxu0 0
    %432 = vmatpush1.bf16.msra.mxu0 0
    %433 = vmatprep.subr.bf16.mxu0 0
    %434 = vmatpush1.bf16.msra.mxu0 0
    %435 = vmatprep.subr.bf16.mxu0 0
    %436 = vmatpush1.bf16.msra.mxu0 0
    %437 = vmatprep.subr.bf16.mxu0 0
    %438 = vmatpush1.bf16.msra.mxu0 0
    %439 = vmatprep.subr.bf16.mxu0 0
    %440 = vmatpush1.bf16.msra.mxu0 0
    %441 = vmatprep.subr.bf16.mxu0 0
    %442 = vmatpush1.bf16.msra.mxu0 0
    %443 = vmatprep.subr.bf16.mxu0 0
    %444 = vmatpush1.bf16.msra.mxu0 0
    %445 = vmatprep.subr.bf16.mxu0 0
    %446 = vmatpush1.bf16.msra.mxu0 0
    %447 = vmatprep.subr.bf16.mxu0 0
    %448 = vmatpush1.bf16.msra.mxu0 0
    %449 = vmatprep.subr.bf16.mxu0 0
    %450 = vmatpush1.bf16.msra.mxu0 0
    %451 = vmatprep.subr.bf16.mxu0 0
    %452 = vmatpush1.bf16.msra.mxu0 0
    %453 = vmatprep.subr.bf16.mxu0 0
    %454 = vmatpush1.bf16.msra.mxu0 0
    %455 = vmatprep.subr.bf16.mxu0 0
    %456 = vmatpush1.bf16.msra.mxu0 0
    %457 = vmatprep.subr.bf16.mxu0 0
    %458 = vmatpush1.bf16.msra.mxu0 0
    %459 = vmatprep.mubr.bf16.mxu0 0
    %460 = vmatmul.mubr.bf16.gmra.mrb[0].mxu0 %v54
    %v461 = vpop.f32.mrb[0].mxu0
    %v462 = vadd.f32 %v50, %v461
    %v463 = vpop.f32.mrb[0].mxu0
    %v464 = vpop.f32.mrb[0].mxu0
    %v465 = vpop.f32.mrb[0].mxu0
    %466 = vdwg.mxu0
    %v467 = vmax.f32 %v462, 0.0
    %v468 = vpack.c.bf16 %v467, %v467
    %470 = vrot.lane.b32.xlu0 %v468, 1
    %v471 = vpop.permute.xlu0 %470
    %v473 = vsel %vm27, 0, %v471
    %474 = vrot.lane.b32.xlu0 %v468, 127
    %v475 = vpop.permute.xlu0 %474
    %v477 = vsel %vm33, %v475, 0
    %v478 = vrot.slane %v468, 4
    %v480 = vsel %vm42, %v473, %v478
    %v482 = vsel %vm42, %v477, 0
    %484 = vmatprep.subr.bf16.mxu0 0
    %485 = vmatpush1.bf16.msra.mxu0 %v480
    %486 = vmatprep.subr.bf16.mxu0 0
    %487 = vmatpush1.bf16.msra.mxu0 %v482
    %488 = vmatprep.subr.bf16.mxu0 0
    %489 = vmatpush1.bf16.msra.mxu0 0
    %490 = vmatprep.subr.bf16.mxu0 0
    %491 = vmatpush1.bf16.msra.mxu0 0
    %492 = vmatprep.subr.bf16.mxu0 0
    %493 = vmatpush1.bf16.msra.mxu0 0
    %494 = vmatprep.subr.bf16.mxu0 0
    %495 = vmatpush1.bf16.msra.mxu0 0
    %496 = vmatprep.subr.bf16.mxu0 0
    %497 = vmatpush1.bf16.msra.mxu0 0
    %498 = vmatprep.subr.bf16.mxu0 0
    %499 = vmatpush1.bf16.msra.mxu0 0
    %500 = vmatprep.subr.bf16.mxu0 0
    %501 = vmatpush1.bf16.msra.mxu0 0
    %502 = vmatprep.subr.bf16.mxu0 0
    %503 = vmatpush1.bf16.msra.mxu0 0
    %504 = vmatprep.subr.bf16.mxu0 0
    %505 = vmatpush1.bf16.msra.mxu0 0
    %506 = vmatprep.subr.bf16.mxu0 0
    %507 = vmatpush1.bf16.msra.mxu0 0
    %508 = vmatprep.subr.bf16.mxu0 0
    %509 = vmatpush1.bf16.msra.mxu0 0
    %510 = vmatprep.subr.bf16.mxu0 0
    %511 = vmatpush1.bf16.msra.mxu0 0
    %512 = vmatprep.subr.bf16.mxu0 0
    %513 = vmatpush1.bf16.msra.mxu0 0
    %514 = vmatprep.subr.bf16.mxu0 0
    %515 = vmatpush1.bf16.msra.mxu0 0
    %516 = vmatprep.mubr.bf16.mxu0 0
    %517 = vmatmul.mubr.bf16.gmra.mrb[0].mxu0 %v123
    %v518 = vpop.f32.mrb[0].mxu0
    %v519 = vadd.f32 %v119, %v518
    %v520 = vpop.f32.mrb[0].mxu0
    %v521 = vpop.f32.mrb[0].mxu0
    %v522 = vpop.f32.mrb[0].mxu0
    %523 = vdwg.mxu0
    %v524 = vmax.f32 %v519, 0.0
    %525 = vxpose.xlu0.b32.start [1/16] %v167, 128
    %526 = vxpose.xlu0.b32.cont [2/16] 0.0, 128
    %527 = vxpose.xlu0.b32.cont [3/16] 0.0, 128
    %528 = vxpose.xlu0.b32.cont [4/16] 0.0, 128
    %529 = vxpose.xlu0.b32.cont [5/16] 0.0, 128
    %530 = vxpose.xlu0.b32.cont [6/16] 0.0, 128
    %531 = vxpose.xlu0.b32.cont [7/16] 0.0, 128
    %532 = vxpose.xlu0.b32.cont [8/16] 0.0, 128
    %533 = vxpose.xlu0.b32.cont [9/16] 0.0, 128
    %534 = vxpose.xlu0.b32.cont [10/16] 0.0, 128
    %535 = vxpose.xlu0.b32.cont [11/16] 0.0, 128
    %536 = vxpose.xlu0.b32.cont [12/16] 0.0, 128
    %537 = vxpose.xlu0.b32.cont [13/16] 0.0, 128
    %538 = vxpose.xlu0.b32.cont [14/16] 0.0, 128
    %539 = vxpose.xlu0.b32.cont [15/16] 0.0, 128
    %540 = vxpose.xlu0.b32.end [16/16] 0.0, 128
    %v541 = vpop.trf.xlu0
    %v542 = vpop.trf.xlu0
    %v543 = vpop.trf.xlu0
    %v544 = vpop.trf.xlu0
    %v545 = vpop.trf.xlu0
    %v546 = vpop.trf.xlu0
    %v547 = vpop.trf.xlu0
    %v548 = vpop.trf.xlu0
    %v549 = vpop.trf.xlu0
    %v550 = vpop.trf.xlu0
    %v551 = vpop.trf.xlu0
    %v552 = vpop.trf.xlu0
    %v553 = vpop.trf.xlu0
    %v554 = vpop.trf.xlu0
    %v555 = vpop.trf.xlu0
    %v556 = vpop.trf.xlu0
    %557 = vxpose.xlu0.b32.start [1/16] %v286, 128
    %558 = vxpose.xlu0.b32.cont [2/16] 0.0, 128
    %559 = vxpose.xlu0.b32.cont [3/16] 0.0, 128
    %560 = vxpose.xlu0.b32.cont [4/16] 0.0, 128
    %561 = vxpose.xlu0.b32.cont [5/16] 0.0, 128
    %562 = vxpose.xlu0.b32.cont [6/16] 0.0, 128
    %563 = vxpose.xlu0.b32.cont [7/16] 0.0, 128
    %564 = vxpose.xlu0.b32.cont [8/16] 0.0, 128
    %565 = vxpose.xlu0.b32.cont [9/16] 0.0, 128
    %566 = vxpose.xlu0.b32.cont [10/16] 0.0, 128
    %567 = vxpose.xlu0.b32.cont [11/16] 0.0, 128
    %568 = vxpose.xlu0.b32.cont [12/16] 0.0, 128
    %569 = vxpose.xlu0.b32.cont [13/16] 0.0, 128
    %570 = vxpose.xlu0.b32.cont [14/16] 0.0, 128
    %571 = vxpose.xlu0.b32.cont [15/16] 0.0, 128
    %572 = vxpose.xlu0.b32.end [16/16] 0.0, 128
    %v573 = vpop.trf.xlu0
    %v574 = vpop.trf.xlu0
    %v575 = vpop.trf.xlu0
    %v576 = vpop.trf.xlu0
    %v577 = vpop.trf.xlu0
    %v578 = vpop.trf.xlu0
    %v579 = vpop.trf.xlu0
    %v580 = vpop.trf.xlu0
    %v581 = vpop.trf.xlu0
    %v582 = vpop.trf.xlu0
    %v583 = vpop.trf.xlu0
    %v584 = vpop.trf.xlu0
    %v585 = vpop.trf.xlu0
    %v586 = vpop.trf.xlu0
    %v587 = vpop.trf.xlu0
    %v588 = vpop.trf.xlu0
    %589 = vxpose.xlu0.b32.start [1/16] %v405, 128
    %590 = vxpose.xlu0.b32.cont [2/16] 0.0, 128
    %591 = vxpose.xlu0.b32.cont [3/16] 0.0, 128
    %592 = vxpose.xlu0.b32.cont [4/16] 0.0, 128
    %593 = vxpose.xlu0.b32.cont [5/16] 0.0, 128
    %594 = vxpose.xlu0.b32.cont [6/16] 0.0, 128
    %595 = vxpose.xlu0.b32.cont [7/16] 0.0, 128
    %596 = vxpose.xlu0.b32.cont [8/16] 0.0, 128
    %597 = vxpose.xlu0.b32.cont [9/16] 0.0, 128
    %598 = vxpose.xlu0.b32.cont [10/16] 0.0, 128
    %599 = vxpose.xlu0.b32.cont [11/16] 0.0, 128
    %600 = vxpose.xlu0.b32.cont [12/16] 0.0, 128
    %601 = vxpose.xlu0.b32.cont [13/16] 0.0, 128
    %602 = vxpose.xlu0.b32.cont [14/16] 0.0, 128
    %603 = vxpose.xlu0.b32.cont [15/16] 0.0, 128
    %604 = vxpose.xlu0.b32.end [16/16] 0.0, 128
    %v605 = vpop.trf.xlu0
    %v606 = vpop.trf.xlu0
    %v607 = vpop.trf.xlu0
    %v608 = vpop.trf.xlu0
    %v609 = vpop.trf.xlu0
    %v610 = vpop.trf.xlu0
    %v611 = vpop.trf.xlu0
    %v612 = vpop.trf.xlu0
    %v613 = vpop.trf.xlu0
    %v614 = vpop.trf.xlu0
    %v615 = vpop.trf.xlu0
    %v616 = vpop.trf.xlu0
    %v617 = vpop.trf.xlu0
    %v618 = vpop.trf.xlu0
    %v619 = vpop.trf.xlu0
    %v620 = vpop.trf.xlu0
    %621 = vxpose.xlu0.b32.start [1/16] %v524, 128
    %622 = vxpose.xlu0.b32.cont [2/16] 0.0, 128
    %623 = vxpose.xlu0.b32.cont [3/16] 0.0, 128
    %624 = vxpose.xlu0.b32.cont [4/16] 0.0, 128
    %625 = vxpose.xlu0.b32.cont [5/16] 0.0, 128
    %626 = vxpose.xlu0.b32.cont [6/16] 0.0, 128
    %627 = vxpose.xlu0.b32.cont [7/16] 0.0, 128
    %628 = vxpose.xlu0.b32.cont [8/16] 0.0, 128
    %629 = vxpose.xlu0.b32.cont [9/16] 0.0, 128
    %630 = vxpose.xlu0.b32.cont [10/16] 0.0, 128
    %631 = vxpose.xlu0.b32.cont [11/16] 0.0, 128
    %632 = vxpose.xlu0.b32.cont [12/16] 0.0, 128
    %633 = vxpose.xlu0.b32.cont [13/16] 0.0, 128
    %634 = vxpose.xlu0.b32.cont [14/16] 0.0, 128
    %635 = vxpose.xlu0.b32.cont [15/16] 0.0, 128
    %636 = vxpose.xlu0.b32.end [16/16] 0.0, 128
    %v637 = vpop.trf.xlu0
    %v638 = vpop.trf.xlu0
    %v639 = vpop.trf.xlu0
    %v640 = vpop.trf.xlu0
    %v641 = vpop.trf.xlu0
    %v642 = vpop.trf.xlu0
    %v643 = vpop.trf.xlu0
    %v644 = vpop.trf.xlu0
    %v645 = vpop.trf.xlu0
    %v646 = vpop.trf.xlu0
    %v647 = vpop.trf.xlu0
    %v648 = vpop.trf.xlu0
    %v649 = vpop.trf.xlu0
    %v650 = vpop.trf.xlu0
    %v651 = vpop.trf.xlu0
    %v652 = vpop.trf.xlu0
    %v661 = vcombine.high %v541, %v541
    %v663 = vunpack.c.l.s4 1983009808
    %v664 = vunpack.c.0.s8 %v663
    %v665 = vlaneseq
    %v666 = vshrl.u32 %v665, 7
    %v667 = vsub.s32 %v664, %v666
    %v668 = vrot.slane %v541, %v667
    %v670 = vunpack.c.l.s4 1983009808
    %v671 = vunpack.c.0.s8 %v670
    %v672 = vlaneseq
    %v673 = vshrl.u32 %v672, 7
    %v674 = vsub.s32 %v671, %v673
    %v675 = vrot.slane %v661, %v674
    %v676 = vcombine.high %v668, %v668
    %v677 = vcombine.high %v675, %v675
    %v678 = vcombine.high %v542, %v542
    %v680 = vunpack.c.l.s4 1983009808
    %v681 = vunpack.c.0.s8 %v680
    %v682 = vlaneseq
    %v683 = vshrl.u32 %v682, 7
    %v684 = vsub.s32 %v681, %v683
    %v685 = vrot.slane %v542, %v684
    %v687 = vunpack.c.l.s4 1983009808
    %v688 = vunpack.c.0.s8 %v687
    %v689 = vlaneseq
    %v690 = vshrl.u32 %v689, 7
    %v691 = vsub.s32 %v688, %v690
    %v692 = vrot.slane %v678, %v691
    %v693 = vcombine.high %v685, %v685
    %v694 = vcombine.high %v692, %v692
    %v695 = vcombine.high %v573, %v573
    %v697 = vunpack.c.l.s4 1983009808
    %v698 = vunpack.c.0.s8 %v697
    %v699 = vlaneseq
    %v700 = vshrl.u32 %v699, 7
    %v701 = vsub.s32 %v698, %v700
    %v702 = vrot.slane %v573, %v701
    %v704 = vunpack.c.l.s4 1983009808
    %v705 = vunpack.c.0.s8 %v704
    %v706 = vlaneseq
    %v707 = vshrl.u32 %v706, 7
    %v708 = vsub.s32 %v705, %v707
    %v709 = vrot.slane %v695, %v708
    %v710 = vcombine.high %v702, %v702
    %v711 = vcombine.high %v709, %v709
    %v712 = vcombine.high %v574, %v574
    %v714 = vunpack.c.l.s4 1983009808
    %v715 = vunpack.c.0.s8 %v714
    %v716 = vlaneseq
    %v717 = vshrl.u32 %v716, 7
    %v718 = vsub.s32 %v715, %v717
    %v719 = vrot.slane %v574, %v718
    %v721 = vunpack.c.l.s4 1983009808
    %v722 = vunpack.c.0.s8 %v721
    %v723 = vlaneseq
    %v724 = vshrl.u32 %v723, 7
    %v725 = vsub.s32 %v722, %v724
    %v726 = vrot.slane %v712, %v725
    %v727 = vcombine.high %v719, %v719
    %v728 = vcombine.high %v726, %v726
    %v729 = vcombine.high %v605, %v605
    %v731 = vunpack.c.l.s4 1983009808
    %v732 = vunpack.c.0.s8 %v731
    %v733 = vlaneseq
    %v734 = vshrl.u32 %v733, 7
    %v735 = vsub.s32 %v732, %v734
    %v736 = vrot.slane %v605, %v735
    %v738 = vunpack.c.l.s4 1983009808
    %v739 = vunpack.c.0.s8 %v738
    %v740 = vlaneseq
    %v741 = vshrl.u32 %v740, 7
    %v742 = vsub.s32 %v739, %v741
    %v743 = vrot.slane %v729, %v742
    %v744 = vcombine.high %v736, %v736
    %v745 = vcombine.high %v743, %v743
    %v746 = vcombine.high %v606, %v606
    %v748 = vunpack.c.l.s4 1983009808
    %v749 = vunpack.c.0.s8 %v748
    %v750 = vlaneseq
    %v751 = vshrl.u32 %v750, 7
    %v752 = vsub.s32 %v749, %v751
    %v753 = vrot.slane %v606, %v752
    %v755 = vunpack.c.l.s4 1983009808
    %v756 = vunpack.c.0.s8 %v755
    %v757 = vlaneseq
    %v758 = vshrl.u32 %v757, 7
    %v759 = vsub.s32 %v756, %v758
    %v760 = vrot.slane %v746, %v759
    %v761 = vcombine.high %v753, %v753
    %v762 = vcombine.high %v760, %v760
    %v763 = vcombine.high %v637, %v637
    %v765 = vunpack.c.l.s4 1983009808
    %v766 = vunpack.c.0.s8 %v765
    %v767 = vlaneseq
    %v768 = vshrl.u32 %v767, 7
    %v769 = vsub.s32 %v766, %v768
    %v770 = vrot.slane %v637, %v769
    %v772 = vunpack.c.l.s4 1983009808
    %v773 = vunpack.c.0.s8 %v772
    %v774 = vlaneseq
    %v775 = vshrl.u32 %v774, 7
    %v776 = vsub.s32 %v773, %v775
    %v777 = vrot.slane %v763, %v776
    %v778 = vcombine.high %v770, %v770
    %v779 = vcombine.high %v777, %v777
    %v780 = vcombine.high %v638, %v638
    %v782 = vunpack.c.l.s4 1983009808
    %v783 = vunpack.c.0.s8 %v782
    %v784 = vlaneseq
    %v785 = vshrl.u32 %v784, 7
    %v786 = vsub.s32 %v783, %v785
    %v787 = vrot.slane %v638, %v786
    %v789 = vunpack.c.l.s4 1983009808
    %v790 = vunpack.c.0.s8 %v789
    %v791 = vlaneseq
    %v792 = vshrl.u32 %v791, 7
    %v793 = vsub.s32 %v790, %v792
    %v794 = vrot.slane %v780, %v793
    %v795 = vcombine.high %v787, %v787
    %v796 = vcombine.high %v794, %v794
    %vm829 = vcmask 58368
    %v830 = vsel %vm829, %v668, 0.0
    %v831 = vrot.slane %v830, 4
    %v832 = vadd.f32 %v830, %v831
    %v833 = vrot.slane %v832, 2
    %v834 = vadd.f32 %v832, %v833
    %v835 = vrot.slane %v834, 1
    %v836 = vadd.f32 %v834, %v835
    %v837 = vsel %vm829, %v676, 0.0
    %v838 = vrot.slane %v837, 4
    %v839 = vadd.f32 %v837, %v838
    %v840 = vrot.slane %v839, 2
    %v841 = vadd.f32 %v839, %v840
    %v842 = vrot.slane %v841, 1
    %v843 = vadd.f32 %v841, %v842
    %v844 = vsel %vm829, %v675, 0.0
    %v845 = vrot.slane %v844, 4
    %v846 = vadd.f32 %v844, %v845
    %v847 = vrot.slane %v846, 2
    %v848 = vadd.f32 %v846, %v847
    %v849 = vrot.slane %v848, 1
    %v850 = vadd.f32 %v848, %v849
    %v851 = vsel %vm829, %v677, 0.0
    %v852 = vrot.slane %v851, 4
    %v853 = vadd.f32 %v851, %v852
    %v854 = vrot.slane %v853, 2
    %v855 = vadd.f32 %v853, %v854
    %v856 = vrot.slane %v855, 1
    %v857 = vadd.f32 %v855, %v856
    %v858 = vsel %vm829, %v685, 0.0
    %v859 = vrot.slane %v858, 4
    %v860 = vadd.f32 %v858, %v859
    %v861 = vrot.slane %v860, 2
    %v862 = vadd.f32 %v860, %v861
    %v863 = vrot.slane %v862, 1
    %v864 = vadd.f32 %v862, %v863
    %v865 = vsel %vm829, %v693, 0.0
    %v866 = vrot.slane %v865, 4
    %v867 = vadd.f32 %v865, %v866
    %v868 = vrot.slane %v867, 2
    %v869 = vadd.f32 %v867, %v868
    %v870 = vrot.slane %v869, 1
    %v871 = vadd.f32 %v869, %v870
    %v872 = vsel %vm829, %v692, 0.0
    %v873 = vrot.slane %v872, 4
    %v874 = vadd.f32 %v872, %v873
    %v875 = vrot.slane %v874, 2
    %v876 = vadd.f32 %v874, %v875
    %v877 = vrot.slane %v876, 1
    %v878 = vadd.f32 %v876, %v877
    %v879 = vsel %vm829, %v694, 0.0
    %v880 = vrot.slane %v879, 4
    %v881 = vadd.f32 %v879, %v880
    %v882 = vrot.slane %v881, 2
    %v883 = vadd.f32 %v881, %v882
    %v884 = vrot.slane %v883, 1
    %v885 = vadd.f32 %v883, %v884
    %v886 = vsel %vm829, %v702, 0.0
    %v887 = vrot.slane %v886, 4
    %v888 = vadd.f32 %v886, %v887
    %v889 = vrot.slane %v888, 2
    %v890 = vadd.f32 %v888, %v889
    %v891 = vrot.slane %v890, 1
    %v892 = vadd.f32 %v890, %v891
    %v893 = vsel %vm829, %v710, 0.0
    %v894 = vrot.slane %v893, 4
    %v895 = vadd.f32 %v893, %v894
    %v896 = vrot.slane %v895, 2
    %v897 = vadd.f32 %v895, %v896
    %v898 = vrot.slane %v897, 1
    %v899 = vadd.f32 %v897, %v898
    %v900 = vsel %vm829, %v709, 0.0
    %v901 = vrot.slane %v900, 4
    %v902 = vadd.f32 %v900, %v901
    %v903 = vrot.slane %v902, 2
    %v904 = vadd.f32 %v902, %v903
    %v905 = vrot.slane %v904, 1
    %v906 = vadd.f32 %v904, %v905
    %v907 = vsel %vm829, %v711, 0.0
    %v908 = vrot.slane %v907, 4
    %v909 = vadd.f32 %v907, %v908
    %v910 = vrot.slane %v909, 2
    %v911 = vadd.f32 %v909, %v910
    %v912 = vrot.slane %v911, 1
    %v913 = vadd.f32 %v911, %v912
    %v914 = vsel %vm829, %v719, 0.0
    %v915 = vrot.slane %v914, 4
    %v916 = vadd.f32 %v914, %v915
    %v917 = vrot.slane %v916, 2
    %v918 = vadd.f32 %v916, %v917
    %v919 = vrot.slane %v918, 1
    %v920 = vadd.f32 %v918, %v919
    %v921 = vsel %vm829, %v727, 0.0
    %v922 = vrot.slane %v921, 4
    %v923 = vadd.f32 %v921, %v922
    %v924 = vrot.slane %v923, 2
    %v925 = vadd.f32 %v923, %v924
    %v926 = vrot.slane %v925, 1
    %v927 = vadd.f32 %v925, %v926
    %v928 = vsel %vm829, %v726, 0.0
    %v929 = vrot.slane %v928, 4
    %v930 = vadd.f32 %v928, %v929
    %v931 = vrot.slane %v930, 2
    %v932 = vadd.f32 %v930, %v931
    %v933 = vrot.slane %v932, 1
    %v934 = vadd.f32 %v932, %v933
    %v935 = vsel %vm829, %v728, 0.0
    %v936 = vrot.slane %v935, 4
    %v937 = vadd.f32 %v935, %v936
    %v938 = vrot.slane %v937, 2
    %v939 = vadd.f32 %v937, %v938
    %v940 = vrot.slane %v939, 1
    %v941 = vadd.f32 %v939, %v940
    %v942 = vsel %vm829, %v736, 0.0
    %v943 = vrot.slane %v942, 4
    %v944 = vadd.f32 %v942, %v943
    %v945 = vrot.slane %v944, 2
    %v946 = vadd.f32 %v944, %v945
    %v947 = vrot.slane %v946, 1
    %v948 = vadd.f32 %v946, %v947
    %v949 = vsel %vm829, %v744, 0.0
    %v950 = vrot.slane %v949, 4
    %v951 = vadd.f32 %v949, %v950
    %v952 = vrot.slane %v951, 2
    %v953 = vadd.f32 %v951, %v952
    %v954 = vrot.slane %v953, 1
    %v955 = vadd.f32 %v953, %v954
    %v956 = vsel %vm829, %v743, 0.0
    %v957 = vrot.slane %v956, 4
    %v958 = vadd.f32 %v956, %v957
    %v959 = vrot.slane %v958, 2
    %v960 = vadd.f32 %v958, %v959
    %v961 = vrot.slane %v960, 1
    %v962 = vadd.f32 %v960, %v961
    %v963 = vsel %vm829, %v745, 0.0
    %v964 = vrot.slane %v963, 4
    %v965 = vadd.f32 %v963, %v964
    %v966 = vrot.slane %v965, 2
    %v967 = vadd.f32 %v965, %v966
    %v968 = vrot.slane %v967, 1
    %v969 = vadd.f32 %v967, %v968
    %v970 = vsel %vm829, %v753, 0.0
    %v971 = vrot.slane %v970, 4
    %v972 = vadd.f32 %v970, %v971
    %v973 = vrot.slane %v972, 2
    %v974 = vadd.f32 %v972, %v973
    %v975 = vrot.slane %v974, 1
    %v976 = vadd.f32 %v974, %v975
    %v977 = vsel %vm829, %v761, 0.0
    %v978 = vrot.slane %v977, 4
    %v979 = vadd.f32 %v977, %v978
    %v980 = vrot.slane %v979, 2
    %v981 = vadd.f32 %v979, %v980
    %v982 = vrot.slane %v981, 1
    %v983 = vadd.f32 %v981, %v982
    %v984 = vsel %vm829, %v760, 0.0
    %v985 = vrot.slane %v984, 4
    %v986 = vadd.f32 %v984, %v985
    %v987 = vrot.slane %v986, 2
    %v988 = vadd.f32 %v986, %v987
    %v989 = vrot.slane %v988, 1
    %v990 = vadd.f32 %v988, %v989
    %v991 = vsel %vm829, %v762, 0.0
    %v992 = vrot.slane %v991, 4
    %v993 = vadd.f32 %v991, %v992
    %v994 = vrot.slane %v993, 2
    %v995 = vadd.f32 %v993, %v994
    %v996 = vrot.slane %v995, 1
    %v997 = vadd.f32 %v995, %v996
    %v998 = vsel %vm829, %v770, 0.0
    %v999 = vrot.slane %v998, 4
    %v1000 = vadd.f32 %v998, %v999
    %v1001 = vrot.slane %v1000, 2
    %v1002 = vadd.f32 %v1000, %v1001
    %v1003 = vrot.slane %v1002, 1
    %v1004 = vadd.f32 %v1002, %v1003
    %v1005 = vsel %vm829, %v778, 0.0
    %v1006 = vrot.slane %v1005, 4
    %v1007 = vadd.f32 %v1005, %v1006
    %v1008 = vrot.slane %v1007, 2
    %v1009 = vadd.f32 %v1007, %v1008
    %v1010 = vrot.slane %v1009, 1
    %v1011 = vadd.f32 %v1009, %v1010
    %v1012 = vsel %vm829, %v777, 0.0
    %v1013 = vrot.slane %v1012, 4
    %v1014 = vadd.f32 %v1012, %v1013
    %v1015 = vrot.slane %v1014, 2
    %v1016 = vadd.f32 %v1014, %v1015
    %v1017 = vrot.slane %v1016, 1
    %v1018 = vadd.f32 %v1016, %v1017
    %v1019 = vsel %vm829, %v779, 0.0
    %v1020 = vrot.slane %v1019, 4
    %v1021 = vadd.f32 %v1019, %v1020
    %v1022 = vrot.slane %v1021, 2
    %v1023 = vadd.f32 %v1021, %v1022
    %v1024 = vrot.slane %v1023, 1
    %v1025 = vadd.f32 %v1023, %v1024
    %v1026 = vsel %vm829, %v787, 0.0
    %v1027 = vrot.slane %v1026, 4
    %v1028 = vadd.f32 %v1026, %v1027
    %v1029 = vrot.slane %v1028, 2
    %v1030 = vadd.f32 %v1028, %v1029
    %v1031 = vrot.slane %v1030, 1
    %v1032 = vadd.f32 %v1030, %v1031
    %v1033 = vsel %vm829, %v795, 0.0
    %v1034 = vrot.slane %v1033, 4
    %v1035 = vadd.f32 %v1033, %v1034
    %v1036 = vrot.slane %v1035, 2
    %v1037 = vadd.f32 %v1035, %v1036
    %v1038 = vrot.slane %v1037, 1
    %v1039 = vadd.f32 %v1037, %v1038
    %v1040 = vsel %vm829, %v794, 0.0
    %v1041 = vrot.slane %v1040, 4
    %v1042 = vadd.f32 %v1040, %v1041
    %v1043 = vrot.slane %v1042, 2
    %v1044 = vadd.f32 %v1042, %v1043
    %v1045 = vrot.slane %v1044, 1
    %v1046 = vadd.f32 %v1044, %v1045
    %v1047 = vsel %vm829, %v796, 0.0
    %v1048 = vrot.slane %v1047, 4
    %v1049 = vadd.f32 %v1047, %v1048
    %v1050 = vrot.slane %v1049, 2
    %v1051 = vadd.f32 %v1049, %v1050
    %v1052 = vrot.slane %v1051, 1
    %v1053 = vadd.f32 %v1051, %v1052
    %v1054 = vmul.f32 %v836, 0.5
    %v1055 = vmul.f32 %v843, 0.5
    %v1056 = vmul.f32 %v850, 0.5
    %v1057 = vmul.f32 %v857, 0.5
    %v1058 = vmul.f32 %v864, 0.5
    %v1059 = vmul.f32 %v871, 0.5
    %v1060 = vmul.f32 %v878, 0.5
    %v1061 = vmul.f32 %v885, 0.5
    %v1062 = vmul.f32 %v892, 0.5
    %v1063 = vmul.f32 %v899, 0.5
    %v1064 = vmul.f32 %v906, 0.5
    %v1065 = vmul.f32 %v913, 0.5
    %v1066 = vmul.f32 %v920, 0.5
    %v1067 = vmul.f32 %v927, 0.5
    %v1068 = vmul.f32 %v934, 0.5
    %v1069 = vmul.f32 %v941, 0.5
    %v1070 = vmul.f32 %v948, 0.5
    %v1071 = vmul.f32 %v955, 0.5
    %v1072 = vmul.f32 %v962, 0.5
    %v1073 = vmul.f32 %v969, 0.5
    %v1074 = vmul.f32 %v976, 0.5
    %v1075 = vmul.f32 %v983, 0.5
    %v1076 = vmul.f32 %v990, 0.5
    %v1077 = vmul.f32 %v997, 0.5
    %v1078 = vmul.f32 %v1004, 0.5
    %v1079 = vmul.f32 %v1011, 0.5
    %v1080 = vmul.f32 %v1018, 0.5
    %v1081 = vmul.f32 %v1025, 0.5
    %v1082 = vmul.f32 %v1032, 0.5
    %v1083 = vmul.f32 %v1039, 0.5
    %v1084 = vmul.f32 %v1046, 0.5
    %v1085 = vmul.f32 %v1053, 0.5
    %vm1118 = vcmask 1041409
    %v1119 = vsel %vm1118, %v1055, %v1054
    %vm1120 = vcmask 1042434
    %v1121 = vsel %vm1120, %v1056, %v1119
    %vm1122 = vcmask 1043459
    %v1123 = vsel %vm1122, %v1057, %v1121
    %vm1124 = vcmask 1044484
    %v1125 = vsel %vm1124, %v1058, %v1123
    %vm1126 = vcmask 1045509
    %v1127 = vsel %vm1126, %v1059, %v1125
    %vm1128 = vcmask 1046534
    %v1129 = vsel %vm1128, %v1060, %v1127
    %vm1130 = vcmask 1047559
    %v1131 = vsel %vm1130, %v1061, %v1129
    %v1132 = vsel %vm1118, %v1063, %v1062
    %v1133 = vsel %vm1120, %v1064, %v1132
    %v1134 = vsel %vm1122, %v1065, %v1133
    %v1135 = vsel %vm1124, %v1066, %v1134
    %v1136 = vsel %vm1126, %v1067, %v1135
    %v1137 = vsel %vm1128, %v1068, %v1136
    %v1138 = vsel %vm1130, %v1069, %v1137
    %v1139 = vsel %vm1118, %v1071, %v1070
    %v1140 = vsel %vm1120, %v1072, %v1139
    %v1141 = vsel %vm1122, %v1073, %v1140
    %v1142 = vsel %vm1124, %v1074, %v1141
    %v1143 = vsel %vm1126, %v1075, %v1142
    %v1144 = vsel %vm1128, %v1076, %v1143
    %v1145 = vsel %vm1130, %v1077, %v1144
    %v1146 = vsel %vm1118, %v1079, %v1078
    %v1147 = vsel %vm1120, %v1080, %v1146
    %v1148 = vsel %vm1122, %v1081, %v1147
    %v1149 = vsel %vm1124, %v1082, %v1148
    %v1150 = vsel %vm1126, %v1083, %v1149
    %v1151 = vsel %vm1128, %v1084, %v1150
    %v1152 = vsel %vm1130, %v1085, %v1151
    %1157 = vxpose.xlu0.b32.start [1/16] %v1131, 128
    %1158 = vxpose.xlu0.b32.cont [2/16] 0.0, 128
    %1159 = vxpose.xlu0.b32.cont [3/16] 0.0, 128
    %1160 = vxpose.xlu0.b32.cont [4/16] 0.0, 128
    %1161 = vxpose.xlu0.b32.cont [5/16] 0.0, 128
    %1162 = vxpose.xlu0.b32.cont [6/16] 0.0, 128
    %1163 = vxpose.xlu0.b32.cont [7/16] 0.0, 128
    %1164 = vxpose.xlu0.b32.cont [8/16] 0.0, 128
    %1165 = vxpose.xlu0.b32.cont [9/16] 0.0, 128
    %1166 = vxpose.xlu0.b32.cont [10/16] 0.0, 128
    %1167 = vxpose.xlu0.b32.cont [11/16] 0.0, 128
    %1168 = vxpose.xlu0.b32.cont [12/16] 0.0, 128
    %1169 = vxpose.xlu0.b32.cont [13/16] 0.0, 128
    %1170 = vxpose.xlu0.b32.cont [14/16] 0.0, 128
    %1171 = vxpose.xlu0.b32.cont [15/16] 0.0, 128
    %1172 = vxpose.xlu0.b32.end [16/16] 0.0, 128
    %v1173 = vpop.trf.xlu0
    %v1174 = vpop.trf.xlu0
    %v1175 = vpop.trf.xlu0
    %v1176 = vpop.trf.xlu0
    %v1177 = vpop.trf.xlu0
    %v1178 = vpop.trf.xlu0
    %v1179 = vpop.trf.xlu0
    %v1180 = vpop.trf.xlu0
    %v1181 = vpop.trf.xlu0
    %v1182 = vpop.trf.xlu0
    %v1183 = vpop.trf.xlu0
    %v1184 = vpop.trf.xlu0
    %v1185 = vpop.trf.xlu0
    %v1186 = vpop.trf.xlu0
    %v1187 = vpop.trf.xlu0
    %v1188 = vpop.trf.xlu0
    %1189 = vxpose.xlu0.b32.start [1/16] %v1138, 128
    %1190 = vxpose.xlu0.b32.cont [2/16] 0.0, 128
    %1191 = vxpose.xlu0.b32.cont [3/16] 0.0, 128
    %1192 = vxpose.xlu0.b32.cont [4/16] 0.0, 128
    %1193 = vxpose.xlu0.b32.cont [5/16] 0.0, 128
    %1194 = vxpose.xlu0.b32.cont [6/16] 0.0, 128
    %1195 = vxpose.xlu0.b32.cont [7/16] 0.0, 128
    %1196 = vxpose.xlu0.b32.cont [8/16] 0.0, 128
    %1197 = vxpose.xlu0.b32.cont [9/16] 0.0, 128
    %1198 = vxpose.xlu0.b32.cont [10/16] 0.0, 128
    %1199 = vxpose.xlu0.b32.cont [11/16] 0.0, 128
    %1200 = vxpose.xlu0.b32.cont [12/16] 0.0, 128
    %1201 = vxpose.xlu0.b32.cont [13/16] 0.0, 128
    %1202 = vxpose.xlu0.b32.cont [14/16] 0.0, 128
    %1203 = vxpose.xlu0.b32.cont [15/16] 0.0, 128
    %1204 = vxpose.xlu0.b32.end [16/16] 0.0, 128
    %v1205 = vpop.trf.xlu0
    %v1206 = vpop.trf.xlu0
    %v1207 = vpop.trf.xlu0
    %v1208 = vpop.trf.xlu0
    %v1209 = vpop.trf.xlu0
    %v1210 = vpop.trf.xlu0
    %v1211 = vpop.trf.xlu0
    %v1212 = vpop.trf.xlu0
    %v1213 = vpop.trf.xlu0
    %v1214 = vpop.trf.xlu0
    %v1215 = vpop.trf.xlu0
    %v1216 = vpop.trf.xlu0
    %v1217 = vpop.trf.xlu0
    %v1218 = vpop.trf.xlu0
    %v1219 = vpop.trf.xlu0
    %v1220 = vpop.trf.xlu0
    %1221 = vxpose.xlu0.b32.start [1/16] %v1145, 128
    %1222 = vxpose.xlu0.b32.cont [2/16] 0.0, 128
    %1223 = vxpose.xlu0.b32.cont [3/16] 0.0, 128
    %1224 = vxpose.xlu0.b32.cont [4/16] 0.0, 128
    %1225 = vxpose.xlu0.b32.cont [5/16] 0.0, 128
    %1226 = vxpose.xlu0.b32.cont [6/16] 0.0, 128
    %1227 = vxpose.xlu0.b32.cont [7/16] 0.0, 128
    %1228 = vxpose.xlu0.b32.cont [8/16] 0.0, 128
    %1229 = vxpose.xlu0.b32.cont [9/16] 0.0, 128
    %1230 = vxpose.xlu0.b32.cont [10/16] 0.0, 128
    %1231 = vxpose.xlu0.b32.cont [11/16] 0.0, 128
    %1232 = vxpose.xlu0.b32.cont [12/16] 0.0, 128
    %1233 = vxpose.xlu0.b32.cont [13/16] 0.0, 128
    %1234 = vxpose.xlu0.b32.cont [14/16] 0.0, 128
    %1235 = vxpose.xlu0.b32.cont [15/16] 0.0, 128
    %1236 = vxpose.xlu0.b32.end [16/16] 0.0, 128
    %v1237 = vpop.trf.xlu0
    %v1238 = vpop.trf.xlu0
    %v1239 = vpop.trf.xlu0
    %v1240 = vpop.trf.xlu0
    %v1241 = vpop.trf.xlu0
    %v1242 = vpop.trf.xlu0
    %v1243 = vpop.trf.xlu0
    %v1244 = vpop.trf.xlu0
    %v1245 = vpop.trf.xlu0
    %v1246 = vpop.trf.xlu0
    %v1247 = vpop.trf.xlu0
    %v1248 = vpop.trf.xlu0
    %v1249 = vpop.trf.xlu0
    %v1250 = vpop.trf.xlu0
    %v1251 = vpop.trf.xlu0
    %v1252 = vpop.trf.xlu0
    %1253 = vxpose.xlu0.b32.start [1/16] %v1152, 128
    %1254 = vxpose.xlu0.b32.cont [2/16] 0.0, 128
    %1255 = vxpose.xlu0.b32.cont [3/16] 0.0, 128
    %1256 = vxpose.xlu0.b32.cont [4/16] 0.0, 128
    %1257 = vxpose.xlu0.b32.cont [5/16] 0.0, 128
    %1258 = vxpose.xlu0.b32.cont [6/16] 0.0, 128
    %1259 = vxpose.xlu0.b32.cont [7/16] 0.0, 128
    %1260 = vxpose.xlu0.b32.cont [8/16] 0.0, 128
    %1261 = vxpose.xlu0.b32.cont [9/16] 0.0, 128
    %1262 = vxpose.xlu0.b32.cont [10/16] 0.0, 128
    %1263 = vxpose.xlu0.b32.cont [11/16] 0.0, 128
    %1264 = vxpose.xlu0.b32.cont [12/16] 0.0, 128
    %1265 = vxpose.xlu0.b32.cont [13/16] 0.0, 128
    %1266 = vxpose.xlu0.b32.cont [14/16] 0.0, 128
    %1267 = vxpose.xlu0.b32.cont [15/16] 0.0, 128
    %1268 = vxpose.xlu0.b32.end [16/16] 0.0, 128
    %v1269 = vpop.trf.xlu0
    %v1270 = vpop.trf.xlu0
    %v1271 = vpop.trf.xlu0
    %v1272 = vpop.trf.xlu0
    %v1273 = vpop.trf.xlu0
    %v1274 = vpop.trf.xlu0
    %v1275 = vpop.trf.xlu0
    %v1276 = vpop.trf.xlu0
    %v1277 = vpop.trf.xlu0
    %v1278 = vpop.trf.xlu0
    %v1279 = vpop.trf.xlu0
    %v1280 = vpop.trf.xlu0
    %v1281 = vpop.trf.xlu0
    %v1282 = vpop.trf.xlu0
    %v1283 = vpop.trf.xlu0
    %v1284 = vpop.trf.xlu0
    %vm1285 = vcmask 64512
    %1286 = vst.msk [vmem:[#allocation2] sm:$0xff] %vm1285, %v1173
    %1287 = vst.msk [vmem:[#allocation2 + $0x8] sm:$0xff] %vm1285, %v1205
    %1288 = vst.msk [vmem:[#allocation2 + $0x10] sm:$0xff] %vm1285, %v1237
    %1289 = vst.msk [vmem:[#allocation2 + $0x18] sm:$0xff] %vm1285, %v1269
    // Predicated region
    $region22: #{f_conv_drop_forward.1} parent=1 // pred_check
      _
    $region23: #{f_conv_drop_forward.1} parent=1 // pred_check_branch
      %1291 = sbr.rel (0) target = $region25
    $region24: #{f_conv_drop_forward.1} parent=1 // pred_region
      %s1293 = ssub.s32 512, 512
      %1294 = vsyncadd [#allocation3], %s1293
      %s1295 = sshll.u32 [#allocation2], 4
      %s1296 = int_to_ptr.vmem [resolvable:$true] %s1295
      %1301 = dma.vmem_to_hbm [thread:$0]  %s1296, 512, %s5, [#allocation3], 128, 128, 8
    $region25: #{f_conv_drop_forward.1} parent=1 // pred_fallthru
      _
    // Predicated region
    $region26: #{f_conv_drop_forward.1} parent=1 // pred_check
      _
    $region27: #{f_conv_drop_forward.1} parent=1 // pred_check_branch
      %1303 = sbr.rel (0) target = $region29
    $region28: #{f_conv_drop_forward.1} parent=1 // pred_region
      %1304 = dma.done [#allocation3], 512
    $region29: #{f_conv_drop_forward.1} parent=1 // pred_fallthru
      _
    %1305 = vsyncpa [#allocation3], 1

</llo_original>
